<compile_context>
chip_gen: v7x
topology: tpu7x:2x2x1
jax: 0.10.0
libtpu: 0.0.40
codegen_flags: <defaults>
</compile_context>

<pallas_src>
import functools
import math

import jax
import jax.numpy as jnp
from jax.experimental import pallas as pl
from jax.experimental.pallas import tpu as pltpu


# ----------------------------- configuration ------------------------------ #
VOCAB = 100          # tiny stand-in for bert-base-uncased vocab
HIDDEN = 32          # bert hidden_size (scaled down)
N_HEADS = 2
HEAD_DIM = HIDDEN // N_HEADS
N_LAYERS = 2
INTERMEDIATE = 64
MAX_POS = 16
BATCH = 2
SEQ = 8
NUM_CLASSES = 2
LN_EPS = 1e-12       # BERT layernorm eps


# ------------------------------ in-kernel helpers -------------------------- #
def _layer_norm(x, gamma, beta):
    """LayerNorm over the last axis; gamma/beta are (1, H)."""
    mu = jnp.mean(x, axis=-1, keepdims=True)
    var = jnp.mean((x - mu) * (x - mu), axis=-1, keepdims=True)
    return (x - mu) * jax.lax.rsqrt(var + LN_EPS) * gamma + beta


# ------------------------------ Pallas kernel ------------------------------ #
def _bert_fused_kernel(x0_ref, mask_ref, sel_ref, embg_ref, embb_ref,
                       wqkv_ref, bqkv_ref, wo_ref, bo_ref,
                       ln1g_ref, ln1b_ref,
                       w1_ref, b1_ref, w2_ref, b2_ref,
                       ln2g_ref, ln2b_ref,
                       poolw_ref, poolb_ref, clsw_ref, clsb_ref,
                       logits_ref, x_scr, *, n_heads, head_dim):
    """One grid step = one BERT encoder layer over the whole (flattened) batch.

    x0:   (B*S, H)   word+pos+tok embeddings (pre-LN)
    mask: (B*S, B*S) block-diagonal additive mask (cross-batch + padding -> -10000)
    sel:  (B, B*S)   one-hot selector picking each batch's CLS row
    wqkv: (H, 3H) per layer, 1/sqrt(head_dim) folded into the Q columns.
    The hidden state lives in x_scr (VMEM) across grid steps; only the final
    (B, NUM_CLASSES) logits are written back to HBM.
    """
    l = pl.program_id(0)
    hidden = n_heads * head_dim

    # ---- grid step 0: embedding LayerNorm (folds the old embed_ln kernel) ----
    @pl.when(l == 0)
    def _():
        x_scr[...] = _layer_norm(x0_ref[...], embg_ref[...], embb_ref[...])

    x = x_scr[...]                                   # (BS, H)  f32
    mask = mask_ref[...]                             # (BS, BS) additive

    # ---- fused QKV projection (single MXU pass, lane width 3H) ----
    qkv = jnp.dot(x, wqkv_ref[...], preferred_element_type=jnp.float32) + bqkv_ref[...]

    # ---- attention over all heads (static unrolled loop, all in VMEM) ----
    wo = wo_ref[...]                                 # (H, H)
    attn = jnp.zeros_like(x)
    for h in range(n_heads):
        q = qkv[:, h * head_dim:(h + 1) * head_dim]                          # pre-scaled
        k = qkv[:, hidden + h * head_dim: hidden + (h + 1) * head_dim]
        v = qkv[:, 2 * hidden + h * head_dim: 2 * hidden + (h + 1) * head_dim]

        s = jnp.dot(q, k.T, preferred_element_type=jnp.float32) + mask       # (BS, BS)
        s = s - jnp.max(s, axis=-1, keepdims=True)
        p = jnp.exp(s)
        p = p * pl.reciprocal(jnp.sum(p, axis=-1, keepdims=True), approx=True)
        ctx = jnp.dot(p, v, preferred_element_type=jnp.float32)              # (BS, DH)
        # concat(ctx_h) @ wo  ==  sum_h ctx_h @ wo[h*DH:(h+1)*DH, :]  (avoids lane concat)
        attn = attn + jnp.dot(ctx, wo[h * head_dim:(h + 1) * head_dim, :],
                              preferred_element_type=jnp.float32)
    attn = attn + bo_ref[...]

    # ---- residual + LN1 ----
    y = _layer_norm(attn + x, ln1g_ref[...], ln1b_ref[...])

    # ---- feed-forward + residual + LN2 ----
    # TODO(synk): HF BERT uses exact (erf) GELU; tanh-approx used here for robust Mosaic lowering.
    h1 = jnp.dot(y, w1_ref[...], preferred_element_type=jnp.float32) + b1_ref[...]
    h1 = jax.nn.gelu(h1, approximate=True)
    h2 = jnp.dot(h1, w2_ref[...], preferred_element_type=jnp.float32) + b2_ref[...]
    x_new = _layer_norm(h2 + y, ln2g_ref[...], ln2b_ref[...])
    x_scr[...] = x_new

    # ---- last grid step: pooler (tanh) + 2-way classifier, write logits ----
    @pl.when(l == pl.num_programs(0) - 1)
    def _():
        cls_tok = jnp.dot(sel_ref[...], x_new, preferred_element_type=jnp.float32)   # (B, H)
        pooled = jnp.tanh(
            jnp.dot(cls_tok, poolw_ref[...], preferred_element_type=jnp.float32)
            + poolb_ref[...])
        logits = jnp.dot(pooled, clsw_ref[...], preferred_element_type=jnp.float32) \
            + clsb_ref[...]
        logits_ref[...] = logits.astype(logits_ref.dtype)


# ------------------------------ parameter init ----------------------------- #
def init_params(key):
    def dense(k, fan_in, fan_out):
        w = jax.random.normal(k, (fan_in, fan_out), jnp.float32) * 0.02
        b = jnp.zeros((fan_out,), jnp.float32)
        return w, b

    scale = 1.0 / math.sqrt(HEAD_DIM)
    keys = iter(jax.random.split(key, 8 + N_LAYERS * 8))

    word_emb = jax.random.normal(next(keys), (VOCAB, HIDDEN), jnp.float32) * 0.02
    pos_emb = jax.random.normal(next(keys), (MAX_POS, HIDDEN), jnp.float32) * 0.02
    tok_emb = jax.random.normal(next(keys), (2, HIDDEN), jnp.float32) * 0.02

    wqkv, bqkv, wo, bo = [], [], [], []
    ln1g, ln1b, w1, b1, w2, b2, ln2g, ln2b = [], [], [], [], [], [], [], []
    for _ in range(N_LAYERS):
        wq, bq = dense(next(keys), HIDDEN, HIDDEN)
        wk, bk = dense(next(keys), HIDDEN, HIDDEN)
        wv, bv = dense(next(keys), HIDDEN, HIDDEN)
        # Fused QKV weight; 1/sqrt(head_dim) folded into the Q columns (mathematically
        # identical to scaling the scores).
        wqkv.append(jnp.concatenate([wq * scale, wk, wv], axis=1))                  # (H, 3H)
        bqkv.append(jnp.concatenate([bq * scale, bk, bv], axis=0).reshape(1, 3 * HIDDEN))
        w, b = dense(next(keys), HIDDEN, HIDDEN)
        wo.append(w); bo.append(b.reshape(1, HIDDEN))
        ln1g.append(jnp.ones((1, HIDDEN), jnp.float32))
        ln1b.append(jnp.zeros((1, HIDDEN), jnp.float32))
        w, b = dense(next(keys), HIDDEN, INTERMEDIATE)
        w1.append(w); b1.append(b.reshape(1, INTERMEDIATE))
        w, b = dense(next(keys), INTERMEDIATE, HIDDEN)
        w2.append(w); b2.append(b.reshape(1, HIDDEN))
        ln2g.append(jnp.ones((1, HIDDEN), jnp.float32))
        ln2b.append(jnp.zeros((1, HIDDEN), jnp.float32))

    pool_w, pool_b = dense(next(keys), HIDDEN, HIDDEN)
    cls_w, cls_b = dense(next(keys), HIDDEN, NUM_CLASSES)

    # Precomputed constants (keyed to BATCH/SEQ): same-batch mask and CLS row selector.
    batch_ids = jnp.repeat(jnp.arange(BATCH), SEQ)                                   # (BS,)
    same_batch = (batch_ids[:, None] == batch_ids[None, :]).astype(jnp.float32)      # (BS, BS)
    cls_sel = jnp.zeros((BATCH, BATCH * SEQ), jnp.float32).at[
        jnp.arange(BATCH), jnp.arange(BATCH) * SEQ].set(1.0)                          # (B, BS)

    return {
        "word_emb": word_emb,
        # pos + token_type-0 embedding, precomputed once (only token_type 0 is used)
        "extra": pos_emb + tok_emb[0][None, :],                                      # (MAX_POS, H)
        "emb_ln_g": jnp.ones((1, HIDDEN), jnp.float32),
        "emb_ln_b": jnp.zeros((1, HIDDEN), jnp.float32),
        "wqkv": jnp.stack(wqkv), "bqkv": jnp.stack(bqkv),
        "wo": jnp.stack(wo), "bo": jnp.stack(bo),
        "ln1_g": jnp.stack(ln1g), "ln1_b": jnp.stack(ln1b),
        "w1": jnp.stack(w1), "b1": jnp.stack(b1),
        "w2": jnp.stack(w2), "b2": jnp.stack(b2),
        "ln2_g": jnp.stack(ln2g), "ln2_b": jnp.stack(ln2b),
        "pool_w": pool_w, "pool_b": pool_b.reshape(1, HIDDEN),
        "cls_w": cls_w, "cls_b": cls_b.reshape(1, NUM_CLASSES),
        "same_batch": same_batch,
        "cls_sel": cls_sel,
    }


# --------------------------------- forward --------------------------------- #
@jax.jit
def sentiment_analyzer_forward(params, input_ids, attention_mask):
    B, S = input_ids.shape
    H = HIDDEN
    BS = B * S

    # Embedding gathers in plain JAX (data-dependent gather); add is fused with them,
    # the embedding LayerNorm happens inside the kernel at grid step 0.
    word = params["word_emb"][input_ids]                                  # (B, S, H)
    x0 = (word + params["extra"][:S][None, :, :]).reshape(BS, H)          # (BS, H)

    # Block-diagonal additive mask: attend only within the same batch row AND to
    # non-padding keys (HF-style (1 - mask) * -10000).
    keymask = attention_mask.reshape(BS).astype(jnp.float32)              # (BS,)
    add_mask = (1.0 - params["same_batch"] * keymask[None, :]) * -10000.0  # (BS, BS)

    def bcast(shape):
        # weight / activation identical for every grid step
        return pl.BlockSpec(shape, lambda l: (0,) * len(shape))

    def per_layer(shape):
        # stacked per-layer tensor: leading N_LAYERS axis indexed by the grid, squeezed
        return pl.BlockSpec((None,) + shape, lambda l: (l,) + (0,) * len(shape))

    kernel = functools.partial(_bert_fused_kernel, n_heads=N_HEADS, head_dim=HEAD_DIM)

    logits = pl.pallas_call(
        kernel,
        out_shape=jax.ShapeDtypeStruct((B, NUM_CLASSES), jnp.float32),
        grid=(N_LAYERS,),
        in_specs=[
            bcast((BS, H)),                       # x0 (pre-LN embeddings)
            bcast((BS, BS)),                      # additive mask
            bcast((B, BS)),                       # CLS selector
            bcast((1, H)), bcast((1, H)),         # embedding LN gamma/beta
            per_layer((H, 3 * H)), per_layer((1, 3 * H)),       # QKV
            per_layer((H, H)), per_layer((1, H)),               # attn output proj
            per_layer((1, H)), per_layer((1, H)),               # LN1
            per_layer((H, INTERMEDIATE)), per_layer((1, INTERMEDIATE)),   # FFN in
            per_layer((INTERMEDIATE, H)), per_layer((1, H)),              # FFN out
            per_layer((1, H)), per_layer((1, H)),               # LN2
            bcast((H, H)), bcast((1, H)),                       # pooler
            bcast((H, NUM_CLASSES)), bcast((1, NUM_CLASSES)),   # classifier
        ],
        out_specs=pl.BlockSpec((B, NUM_CLASSES), lambda l: (0, 0)),
        scratch_shapes=[pltpu.VMEM((BS, H), jnp.float32)],      # resident hidden state
        compiler_params=pltpu.CompilerParams(dimension_semantics=("arbitrary",)),
    )(x0, add_mask, params["cls_sel"], params["emb_ln_g"], params["emb_ln_b"],
      params["wqkv"], params["bqkv"], params["wo"], params["bo"],
      params["ln1_g"], params["ln1_b"], params["w1"], params["b1"],
      params["w2"], params["b2"], params["ln2_g"], params["ln2_b"],
      params["pool_w"], params["pool_b"], params["cls_w"], params["cls_b"])
    return logits


# ----------------------------------- main ----------------------------------- #
if __name__ == "__main__":
    key = jax.random.PRNGKey(0)
    k_param, k_ids = jax.random.split(key)

    params = init_params(k_param)
    input_ids = jax.random.randint(k_ids, (BATCH, SEQ), 0, VOCAB, dtype=jnp.int32)
    attention_mask = jnp.ones((BATCH, SEQ), dtype=jnp.int32)
    # make the last two tokens of sample 1 padding, to exercise the mask path
    attention_mask = attention_mask.at[1, -2:].set(0)

    logits = sentiment_analyzer_forward(params, input_ids, attention_mask)
    logits = jax.block_until_ready(logits)
    assert logits.shape == (BATCH, NUM_CLASSES)
    assert bool(jnp.all(jnp.isfinite(logits)))
    print("KERNEL_OK")
</pallas_src>

<mosaic_0001>
module attributes {stable_mosaic.version = 11 : i64} {
  func.func @_bert_fused_kernel(%arg0: i32, %arg1: memref<16x32xf32, #tpu.memory_space<vmem>>, %arg2: memref<16x16xf32, #tpu.memory_space<vmem>>, %arg3: memref<2x16xf32, #tpu.memory_space<vmem>>, %arg4: memref<1x32xf32, #tpu.memory_space<vmem>>, %arg5: memref<1x32xf32, #tpu.memory_space<vmem>>, %arg6: memref<1x32x96xf32, #tpu.memory_space<vmem>>, %arg7: memref<1x1x96xf32, #tpu.memory_space<vmem>>, %arg8: memref<1x32x32xf32, #tpu.memory_space<vmem>>, %arg9: memref<1x1x32xf32, #tpu.memory_space<vmem>>, %arg10: memref<1x1x32xf32, #tpu.memory_space<vmem>>, %arg11: memref<1x1x32xf32, #tpu.memory_space<vmem>>, %arg12: memref<1x32x64xf32, #tpu.memory_space<vmem>>, %arg13: memref<1x1x64xf32, #tpu.memory_space<vmem>>, %arg14: memref<1x64x32xf32, #tpu.memory_space<vmem>>, %arg15: memref<1x1x32xf32, #tpu.memory_space<vmem>>, %arg16: memref<1x1x32xf32, #tpu.memory_space<vmem>>, %arg17: memref<1x1x32xf32, #tpu.memory_space<vmem>>, %arg18: memref<32x32xf32, #tpu.memory_space<vmem>>, %arg19: memref<1x32xf32, #tpu.memory_space<vmem>>, %arg20: memref<32x2xf32, #tpu.memory_space<vmem>>, %arg21: memref<1x2xf32, #tpu.memory_space<vmem>>, %arg22: memref<2x2xf32, #tpu.memory_space<vmem>>, %arg23: memref<16x32xf32, #tpu.memory_space<vmem>>) attributes {dimension_semantics = [#tpu.dimension_semantics<arbitrary>], iteration_bounds = array<i64: 2>, scalar_prefetch = 0 : i64, scratch_operands = 1 : i64, tpu.core_type = #tpu.core_type<tc>, window_params = [{pipeline_mode = #tpu.pipeline_mode<synchronous>, transform_indices = @transform_0, window_bounds = array<i64: 16, 32>}, {pipeline_mode = #tpu.pipeline_mode<synchronous>, transform_indices = @transform_1, window_bounds = array<i64: 16, 16>}, {pipeline_mode = #tpu.pipeline_mode<synchronous>, transform_indices = @transform_2, window_bounds = array<i64: 2, 16>}, {pipeline_mode = #tpu.pipeline_mode<synchronous>, transform_indices = @transform_3, window_bounds = array<i64: 1, 32>}, {pipeline_mode = #tpu.pipeline_mode<synchronous>, transform_indices = @transform_4, window_bounds = array<i64: 1, 32>}, {transform_indices = @transform_5, window_bounds = array<i64: 1, 32, 96>}, {transform_indices = @transform_6, window_bounds = array<i64: 1, 1, 96>}, {transform_indices = @transform_7, window_bounds = array<i64: 1, 32, 32>}, {transform_indices = @transform_8, window_bounds = array<i64: 1, 1, 32>}, {transform_indices = @transform_9, window_bounds = array<i64: 1, 1, 32>}, {transform_indices = @transform_10, window_bounds = array<i64: 1, 1, 32>}, {transform_indices = @transform_11, window_bounds = array<i64: 1, 32, 64>}, {transform_indices = @transform_12, window_bounds = array<i64: 1, 1, 64>}, {transform_indices = @transform_13, window_bounds = array<i64: 1, 64, 32>}, {transform_indices = @transform_14, window_bounds = array<i64: 1, 1, 32>}, {transform_indices = @transform_15, window_bounds = array<i64: 1, 1, 32>}, {transform_indices = @transform_16, window_bounds = array<i64: 1, 1, 32>}, {pipeline_mode = #tpu.pipeline_mode<synchronous>, transform_indices = @transform_17, window_bounds = array<i64: 32, 32>}, {pipeline_mode = #tpu.pipeline_mode<synchronous>, transform_indices = @transform_18, window_bounds = array<i64: 1, 32>}, {pipeline_mode = #tpu.pipeline_mode<synchronous>, transform_indices = @transform_19, window_bounds = array<i64: 32, 2>}, {pipeline_mode = #tpu.pipeline_mode<synchronous>, transform_indices = @transform_20, window_bounds = array<i64: 1, 2>}, {pipeline_mode = #tpu.pipeline_mode<synchronous>, transform_indices = @transform_21, window_bounds = array<i64: 2, 2>}]} {
    %c0_i32 = arith.constant 0 : i32
    %0 = arith.cmpi eq, %arg0, %c0_i32 : i32
    %1 = arith.extui %0 : i1 to i32
    %c0_i32_0 = arith.constant 0 : i32
    %2 = arith.cmpi ne, %1, %c0_i32_0 : i32
    scf.if %2 {
      %c0_70 = arith.constant 0 : index
      %c0_71 = arith.constant 0 : index
      %148 = vector.load %arg1[%c0_70, %c0_71] : memref<16x32xf32, #tpu.memory_space<vmem>>, vector<16x32xf32>
      %c0_72 = arith.constant 0 : index
      %c0_73 = arith.constant 0 : index
      %149 = vector.load %arg4[%c0_72, %c0_73] : memref<1x32xf32, #tpu.memory_space<vmem>>, vector<1x32xf32>
      %c0_74 = arith.constant 0 : index
      %c0_75 = arith.constant 0 : index
      %150 = vector.load %arg5[%c0_74, %c0_75] : memref<1x32xf32, #tpu.memory_space<vmem>>, vector<1x32xf32>
      %cst_76 = arith.constant dense<0.000000e+00> : vector<16xf32>
      %151 = vector.multi_reduction <add>, %148, %cst_76 [1] : vector<16x32xf32> to vector<16xf32>
      %152 = vector.shape_cast %151 : vector<16xf32> to vector<16x1xf32>
      %cst_77 = arith.constant 3.200000e+01 : f32
      %153 = vector.broadcast %cst_77 : f32 to vector<16x1xf32>
      %154 = arith.divf %152, %153 : vector<16x1xf32>
      %155 = vector.broadcast %154 : vector<16x1xf32> to vector<16x32xf32>
      %156 = arith.subf %148, %155 : vector<16x32xf32>
      %157 = vector.broadcast %154 : vector<16x1xf32> to vector<16x32xf32>
      %158 = arith.subf %148, %157 : vector<16x32xf32>
      %159 = arith.mulf %156, %158 : vector<16x32xf32>
      %cst_78 = arith.constant dense<0.000000e+00> : vector<16xf32>
      %160 = vector.multi_reduction <add>, %159, %cst_78 [1] : vector<16x32xf32> to vector<16xf32>
      %161 = vector.shape_cast %160 : vector<16xf32> to vector<16x1xf32>
      %cst_79 = arith.constant 3.200000e+01 : f32
      %162 = vector.broadcast %cst_79 : f32 to vector<16x1xf32>
      %163 = arith.divf %161, %162 : vector<16x1xf32>
      %164 = vector.broadcast %154 : vector<16x1xf32> to vector<16x32xf32>
      %165 = arith.subf %148, %164 : vector<16x32xf32>
      %cst_80 = arith.constant 9.99999996E-13 : f32
      %166 = vector.broadcast %cst_80 : f32 to vector<16x1xf32>
      %167 = arith.addf %163, %166 : vector<16x1xf32>
      %168 = math.rsqrt %167 : vector<16x1xf32>
      %169 = vector.broadcast %168 : vector<16x1xf32> to vector<16x32xf32>
      %170 = arith.mulf %165, %169 : vector<16x32xf32>
      %171 = vector.broadcast %149 : vector<1x32xf32> to vector<16x32xf32>
      %172 = arith.mulf %170, %171 : vector<16x32xf32>
      %173 = vector.broadcast %150 : vector<1x32xf32> to vector<16x32xf32>
      %174 = arith.addf %172, %173 : vector<16x32xf32>
      %c0_81 = arith.constant 0 : index
      %c0_82 = arith.constant 0 : index
      %175 = vector.load %arg23[%c0_81, %c0_82] : memref<16x32xf32, #tpu.memory_space<vmem>>, vector<16x32xf32>
      tpu.vector_store %arg23[%c0_81, %c0_82], %174 {strides = array<i32>} : memref<16x32xf32, #tpu.memory_space<vmem>>, vector<16x32xf32>,
    } else {
    }
    %c0 = arith.constant 0 : index
    %c0_1 = arith.constant 0 : index
    %3 = vector.load %arg23[%c0, %c0_1] : memref<16x32xf32, #tpu.memory_space<vmem>>, vector<16x32xf32>
    %c0_2 = arith.constant 0 : index
    %c0_3 = arith.constant 0 : index
    %4 = vector.load %arg2[%c0_2, %c0_3] : memref<16x16xf32, #tpu.memory_space<vmem>>, vector<16x16xf32>
    %c0_4 = arith.constant 0 : index
    %c0_5 = arith.constant 0 : index
    %c0_6 = arith.constant 0 : index
    %5 = vector.load %arg6[%c0_4, %c0_5, %c0_6] : memref<1x32x96xf32, #tpu.memory_space<vmem>>, vector<1x32x96xf32>
    %6 = vector.shape_cast %5 : vector<1x32x96xf32> to vector<32x96xf32>
    %cst = arith.constant dense<0.000000e+00> : vector<16x96xf32>
    %7 = tpu.matmul %3, %6, %cst {dimension_numbers = #tpu.dot_dimension_numbers<[1], [0], [0], [1], [0, 0, 1, 1], [], []>} : vector<16x32xf32>, vector<32x96xf32>, vector<16x96xf32> -> vector<16x96xf32>
    %c0_7 = arith.constant 0 : index
    %c0_8 = arith.constant 0 : index
    %c0_9 = arith.constant 0 : index
    %8 = vector.load %arg7[%c0_7, %c0_8, %c0_9] : memref<1x1x96xf32, #tpu.memory_space<vmem>>, vector<1x1x96xf32>
    %9 = vector.shape_cast %8 : vector<1x1x96xf32> to vector<1x96xf32>
    %10 = vector.broadcast %9 : vector<1x96xf32> to vector<16x96xf32>
    %11 = arith.addf %7, %10 : vector<16x96xf32>
    %c0_10 = arith.constant 0 : index
    %c0_11 = arith.constant 0 : index
    %c0_12 = arith.constant 0 : index
    %12 = vector.load %arg8[%c0_10, %c0_11, %c0_12] : memref<1x32x32xf32, #tpu.memory_space<vmem>>, vector<1x32x32xf32>
    %13 = vector.shape_cast %12 : vector<1x32x32xf32> to vector<32x32xf32>
    %cst_13 = arith.constant 0.000000e+00 : f32
    %14 = vector.broadcast %cst_13 : f32 to vector<16x32xf32>
    %15 = vector.extract_strided_slice %11 {offsets = [0, 0], sizes = [16, 16], strides = [1, 1]} : vector<16x96xf32> to vector<16x16xf32>
    %16 = vector.extract_strided_slice %11 {offsets = [0, 32], sizes = [16, 16], strides = [1, 1]} : vector<16x96xf32> to vector<16x16xf32>
    %17 = vector.extract_strided_slice %11 {offsets = [0, 64], sizes = [16, 16], strides = [1, 1]} : vector<16x96xf32> to vector<16x16xf32>
    %18 = tpu.transpose %16, [1, 0] : vector<16x16xf32> -> vector<16x16xf32>
    %cst_14 = arith.constant dense<0.000000e+00> : vector<16x16xf32>
    %19 = tpu.matmul %15, %18, %cst_14 {dimension_numbers = #tpu.dot_dimension_numbers<[1], [0], [0], [1], [0, 0, 1, 1], [], []>} : vector<16x16xf32>, vector<16x16xf32>, vector<16x16xf32> -> vector<16x16xf32>
    %20 = arith.addf %19, %4 : vector<16x16xf32>
    %cst_15 = arith.constant dense<0xFF800000> : vector<16xf32>
    %21 = vector.multi_reduction <maximumf>, %20, %cst_15 [1] : vector<16x16xf32> to vector<16xf32>
    %22 = vector.shape_cast %21 : vector<16xf32> to vector<16x1xf32>
    %23 = vector.broadcast %22 : vector<16x1xf32> to vector<16x16xf32>
    %24 = arith.subf %20, %23 : vector<16x16xf32>
    %25 = math.exp %24 : vector<16x16xf32>
    %cst_16 = arith.constant dense<0.000000e+00> : vector<16xf32>
    %26 = vector.multi_reduction <add>, %25, %cst_16 [1] : vector<16x16xf32> to vector<16xf32>
    %27 = vector.shape_cast %26 : vector<16xf32> to vector<16x1xf32>
    %28 = tpu.reciprocal %27 {approx = true} : vector<16x1xf32> -> vector<16x1xf32>
    %29 = vector.broadcast %28 : vector<16x1xf32> to vector<16x16xf32>
    %30 = arith.mulf %25, %29 : vector<16x16xf32>
    %cst_17 = arith.constant dense<0.000000e+00> : vector<16x16xf32>
    %31 = tpu.matmul %30, %17, %cst_17 {dimension_numbers = #tpu.dot_dimension_numbers<[1], [0], [0], [1], [0, 0, 1, 1], [], []>} : vector<16x16xf32>, vector<16x16xf32>, vector<16x16xf32> -> vector<16x16xf32>
    %32 = vector.extract_strided_slice %13 {offsets = [0, 0], sizes = [16, 32], strides = [1, 1]} : vector<32x32xf32> to vector<16x32xf32>
    %cst_18 = arith.constant dense<0.000000e+00> : vector<16x32xf32>
    %33 = tpu.matmul %31, %32, %cst_18 {dimension_numbers = #tpu.dot_dimension_numbers<[1], [0], [0], [1], [0, 0, 1, 1], [], []>} : vector<16x16xf32>, vector<16x32xf32>, vector<16x32xf32> -> vector<16x32xf32>
    %34 = arith.addf %14, %33 : vector<16x32xf32>
    %35 = vector.extract_strided_slice %11 {offsets = [0, 16], sizes = [16, 16], strides = [1, 1]} : vector<16x96xf32> to vector<16x16xf32>
    %36 = vector.extract_strided_slice %11 {offsets = [0, 48], sizes = [16, 16], strides = [1, 1]} : vector<16x96xf32> to vector<16x16xf32>
    %37 = vector.extract_strided_slice %11 {offsets = [0, 80], sizes = [16, 16], strides = [1, 1]} : vector<16x96xf32> to vector<16x16xf32>
    %38 = tpu.transpose %36, [1, 0] : vector<16x16xf32> -> vector<16x16xf32>
    %cst_19 = arith.constant dense<0.000000e+00> : vector<16x16xf32>
    %39 = tpu.matmul %35, %38, %cst_19 {dimension_numbers = #tpu.dot_dimension_numbers<[1], [0], [0], [1], [0, 0, 1, 1], [], []>} : vector<16x16xf32>, vector<16x16xf32>, vector<16x16xf32> -> vector<16x16xf32>
    %40 = arith.addf %39, %4 : vector<16x16xf32>
    %cst_20 = arith.constant dense<0xFF800000> : vector<16xf32>
    %41 = vector.multi_reduction <maximumf>, %40, %cst_20 [1] : vector<16x16xf32> to vector<16xf32>
    %42 = vector.shape_cast %41 : vector<16xf32> to vector<16x1xf32>
    %43 = vector.broadcast %42 : vector<16x1xf32> to vector<16x16xf32>
    %44 = arith.subf %40, %43 : vector<16x16xf32>
    %45 = math.exp %44 : vector<16x16xf32>
    %cst_21 = arith.constant dense<0.000000e+00> : vector<16xf32>
    %46 = vector.multi_reduction <add>, %45, %cst_21 [1] : vector<16x16xf32> to vector<16xf32>
    %47 = vector.shape_cast %46 : vector<16xf32> to vector<16x1xf32>
    %48 = tpu.reciprocal %47 {approx = true} : vector<16x1xf32> -> vector<16x1xf32>
    %49 = vector.broadcast %48 : vector<16x1xf32> to vector<16x16xf32>
    %50 = arith.mulf %45, %49 : vector<16x16xf32>
    %cst_22 = arith.constant dense<0.000000e+00> : vector<16x16xf32>
    %51 = tpu.matmul %50, %37, %cst_22 {dimension_numbers = #tpu.dot_dimension_numbers<[1], [0], [0], [1], [0, 0, 1, 1], [], []>} : vector<16x16xf32>, vector<16x16xf32>, vector<16x16xf32> -> vector<16x16xf32>
    %52 = vector.extract_strided_slice %13 {offsets = [16, 0], sizes = [16, 32], strides = [1, 1]} : vector<32x32xf32> to vector<16x32xf32>
    %cst_23 = arith.constant dense<0.000000e+00> : vector<16x32xf32>
    %53 = tpu.matmul %51, %52, %cst_23 {dimension_numbers = #tpu.dot_dimension_numbers<[1], [0], [0], [1], [0, 0, 1, 1], [], []>} : vector<16x16xf32>, vector<16x32xf32>, vector<16x32xf32> -> vector<16x32xf32>
    %54 = arith.addf %34, %53 : vector<16x32xf32>
    %c0_24 = arith.constant 0 : index
    %c0_25 = arith.constant 0 : index
    %c0_26 = arith.constant 0 : index
    %55 = vector.load %arg9[%c0_24, %c0_25, %c0_26] : memref<1x1x32xf32, #tpu.memory_space<vmem>>, vector<1x1x32xf32>
    %56 = vector.shape_cast %55 : vector<1x1x32xf32> to vector<1x32xf32>
    %57 = vector.broadcast %56 : vector<1x32xf32> to vector<16x32xf32>
    %58 = arith.addf %54, %57 : vector<16x32xf32>
    %59 = arith.addf %58, %3 : vector<16x32xf32>
    %c0_27 = arith.constant 0 : index
    %c0_28 = arith.constant 0 : index
    %c0_29 = arith.constant 0 : index
    %60 = vector.load %arg10[%c0_27, %c0_28, %c0_29] : memref<1x1x32xf32, #tpu.memory_space<vmem>>, vector<1x1x32xf32>
    %61 = vector.shape_cast %60 : vector<1x1x32xf32> to vector<1x32xf32>
    %c0_30 = arith.constant 0 : index
    %c0_31 = arith.constant 0 : index
    %c0_32 = arith.constant 0 : index
    %62 = vector.load %arg11[%c0_30, %c0_31, %c0_32] : memref<1x1x32xf32, #tpu.memory_space<vmem>>, vector<1x1x32xf32>
    %63 = vector.shape_cast %62 : vector<1x1x32xf32> to vector<1x32xf32>
    %cst_33 = arith.constant dense<0.000000e+00> : vector<16xf32>
    %64 = vector.multi_reduction <add>, %59, %cst_33 [1] : vector<16x32xf32> to vector<16xf32>
    %65 = vector.shape_cast %64 : vector<16xf32> to vector<16x1xf32>
    %cst_34 = arith.constant 3.200000e+01 : f32
    %66 = vector.broadcast %cst_34 : f32 to vector<16x1xf32>
    %67 = arith.divf %65, %66 : vector<16x1xf32>
    %68 = vector.broadcast %67 : vector<16x1xf32> to vector<16x32xf32>
    %69 = arith.subf %59, %68 : vector<16x32xf32>
    %70 = vector.broadcast %67 : vector<16x1xf32> to vector<16x32xf32>
    %71 = arith.subf %59, %70 : vector<16x32xf32>
    %72 = arith.mulf %69, %71 : vector<16x32xf32>
    %cst_35 = arith.constant dense<0.000000e+00> : vector<16xf32>
    %73 = vector.multi_reduction <add>, %72, %cst_35 [1] : vector<16x32xf32> to vector<16xf32>
    %74 = vector.shape_cast %73 : vector<16xf32> to vector<16x1xf32>
    %cst_36 = arith.constant 3.200000e+01 : f32
    %75 = vector.broadcast %cst_36 : f32 to vector<16x1xf32>
    %76 = arith.divf %74, %75 : vector<16x1xf32>
    %77 = vector.broadcast %67 : vector<16x1xf32> to vector<16x32xf32>
    %78 = arith.subf %59, %77 : vector<16x32xf32>
    %cst_37 = arith.constant 9.99999996E-13 : f32
    %79 = vector.broadcast %cst_37 : f32 to vector<16x1xf32>
    %80 = arith.addf %76, %79 : vector<16x1xf32>
    %81 = math.rsqrt %80 : vector<16x1xf32>
    %82 = vector.broadcast %81 : vector<16x1xf32> to vector<16x32xf32>
    %83 = arith.mulf %78, %82 : vector<16x32xf32>
    %84 = vector.broadcast %61 : vector<1x32xf32> to vector<16x32xf32>
    %85 = arith.mulf %83, %84 : vector<16x32xf32>
    %86 = vector.broadcast %63 : vector<1x32xf32> to vector<16x32xf32>
    %87 = arith.addf %85, %86 : vector<16x32xf32>
    %c0_38 = arith.constant 0 : index
    %c0_39 = arith.constant 0 : index
    %c0_40 = arith.constant 0 : index
    %88 = vector.load %arg12[%c0_38, %c0_39, %c0_40] : memref<1x32x64xf32, #tpu.memory_space<vmem>>, vector<1x32x64xf32>
    %89 = vector.shape_cast %88 : vector<1x32x64xf32> to vector<32x64xf32>
    %cst_41 = arith.constant dense<0.000000e+00> : vector<16x64xf32>
    %90 = tpu.matmul %87, %89, %cst_41 {dimension_numbers = #tpu.dot_dimension_numbers<[1], [0], [0], [1], [0, 0, 1, 1], [], []>} : vector<16x32xf32>, vector<32x64xf32>, vector<16x64xf32> -> vector<16x64xf32>
    %c0_42 = arith.constant 0 : index
    %c0_43 = arith.constant 0 : index
    %c0_44 = arith.constant 0 : index
    %91 = vector.load %arg13[%c0_42, %c0_43, %c0_44] : memref<1x1x64xf32, #tpu.memory_space<vmem>>, vector<1x1x64xf32>
    %92 = vector.shape_cast %91 : vector<1x1x64xf32> to vector<1x64xf32>
    %93 = vector.broadcast %92 : vector<1x64xf32> to vector<16x64xf32>
    %94 = arith.addf %90, %93 : vector<16x64xf32>
    %95 = arith.mulf %94, %94 : vector<16x64xf32>
    %96 = arith.mulf %94, %95 : vector<16x64xf32>
    %cst_45 = arith.constant 4.471500e-02 : f32
    %97 = vector.broadcast %cst_45 : f32 to vector<16x64xf32>
    %98 = arith.mulf %97, %96 : vector<16x64xf32>
    %99 = arith.addf %94, %98 : vector<16x64xf32>
    %cst_46 = arith.constant 0.797884583 : f32
    %100 = vector.broadcast %cst_46 : f32 to vector<16x64xf32>
    %101 = arith.mulf %100, %99 : vector<16x64xf32>
    %102 = math.tanh %101 : vector<16x64xf32>
    %cst_47 = arith.constant 1.000000e+00 : f32
    %103 = vector.broadcast %cst_47 : f32 to vector<16x64xf32>
    %104 = arith.addf %103, %102 : vector<16x64xf32>
    %cst_48 = arith.constant 5.000000e-01 : f32
    %105 = vector.broadcast %cst_48 : f32 to vector<16x64xf32>
    %106 = arith.mulf %105, %104 : vector<16x64xf32>
    %107 = arith.mulf %94, %106 : vector<16x64xf32>
    %c0_49 = arith.constant 0 : index
    %c0_50 = arith.constant 0 : index
    %c0_51 = arith.constant 0 : index
    %108 = vector.load %arg14[%c0_49, %c0_50, %c0_51] : memref<1x64x32xf32, #tpu.memory_space<vmem>>, vector<1x64x32xf32>
    %109 = vector.shape_cast %108 : vector<1x64x32xf32> to vector<64x32xf32>
    %cst_52 = arith.constant dense<0.000000e+00> : vector<16x32xf32>
    %110 = tpu.matmul %107, %109, %cst_52 {dimension_numbers = #tpu.dot_dimension_numbers<[1], [0], [0], [1], [0, 0, 1, 1], [], []>} : vector<16x64xf32>, vector<64x32xf32>, vector<16x32xf32> -> vector<16x32xf32>
    %c0_53 = arith.constant 0 : index
    %c0_54 = arith.constant 0 : index
    %c0_55 = arith.constant 0 : index
    %111 = vector.load %arg15[%c0_53, %c0_54, %c0_55] : memref<1x1x32xf32, #tpu.memory_space<vmem>>, vector<1x1x32xf32>
    %112 = vector.shape_cast %111 : vector<1x1x32xf32> to vector<1x32xf32>
    %113 = vector.broadcast %112 : vector<1x32xf32> to vector<16x32xf32>
    %114 = arith.addf %110, %113 : vector<16x32xf32>
    %115 = arith.addf %114, %87 : vector<16x32xf32>
    %c0_56 = arith.constant 0 : index
    %c0_57 = arith.constant 0 : index
    %c0_58 = arith.constant 0 : index
    %116 = vector.load %arg16[%c0_56, %c0_57, %c0_58] : memref<1x1x32xf32, #tpu.memory_space<vmem>>, vector<1x1x32xf32>
    %117 = vector.shape_cast %116 : vector<1x1x32xf32> to vector<1x32xf32>
    %c0_59 = arith.constant 0 : index
    %c0_60 = arith.constant 0 : index
    %c0_61 = arith.constant 0 : index
    %118 = vector.load %arg17[%c0_59, %c0_60, %c0_61] : memref<1x1x32xf32, #tpu.memory_space<vmem>>, vector<1x1x32xf32>
    %119 = vector.shape_cast %118 : vector<1x1x32xf32> to vector<1x32xf32>
    %cst_62 = arith.constant dense<0.000000e+00> : vector<16xf32>
    %120 = vector.multi_reduction <add>, %115, %cst_62 [1] : vector<16x32xf32> to vector<16xf32>
    %121 = vector.shape_cast %120 : vector<16xf32> to vector<16x1xf32>
    %cst_63 = arith.constant 3.200000e+01 : f32
    %122 = vector.broadcast %cst_63 : f32 to vector<16x1xf32>
    %123 = arith.divf %121, %122 : vector<16x1xf32>
    %124 = vector.broadcast %123 : vector<16x1xf32> to vector<16x32xf32>
    %125 = arith.subf %115, %124 : vector<16x32xf32>
    %126 = vector.broadcast %123 : vector<16x1xf32> to vector<16x32xf32>
    %127 = arith.subf %115, %126 : vector<16x32xf32>
    %128 = arith.mulf %125, %127 : vector<16x32xf32>
    %cst_64 = arith.constant dense<0.000000e+00> : vector<16xf32>
    %129 = vector.multi_reduction <add>, %128, %cst_64 [1] : vector<16x32xf32> to vector<16xf32>
    %130 = vector.shape_cast %129 : vector<16xf32> to vector<16x1xf32>
    %cst_65 = arith.constant 3.200000e+01 : f32
    %131 = vector.broadcast %cst_65 : f32 to vector<16x1xf32>
    %132 = arith.divf %130, %131 : vector<16x1xf32>
    %133 = vector.broadcast %123 : vector<16x1xf32> to vector<16x32xf32>
    %134 = arith.subf %115, %133 : vector<16x32xf32>
    %cst_66 = arith.constant 9.99999996E-13 : f32
    %135 = vector.broadcast %cst_66 : f32 to vector<16x1xf32>
    %136 = arith.addf %132, %135 : vector<16x1xf32>
    %137 = math.rsqrt %136 : vector<16x1xf32>
    %138 = vector.broadcast %137 : vector<16x1xf32> to vector<16x32xf32>
    %139 = arith.mulf %134, %138 : vector<16x32xf32>
    %140 = vector.broadcast %117 : vector<1x32xf32> to vector<16x32xf32>
    %141 = arith.mulf %139, %140 : vector<16x32xf32>
    %142 = vector.broadcast %119 : vector<1x32xf32> to vector<16x32xf32>
    %143 = arith.addf %141, %142 : vector<16x32xf32>
    %c0_67 = arith.constant 0 : index
    %c0_68 = arith.constant 0 : index
    %144 = vector.load %arg23[%c0_67, %c0_68] : memref<16x32xf32, #tpu.memory_space<vmem>>, vector<16x32xf32>
    tpu.vector_store %arg23[%c0_67, %c0_68], %143 {strides = array<i32>} : memref<16x32xf32, #tpu.memory_space<vmem>>, vector<16x32xf32>,
    %c1_i32 = arith.constant 1 : i32
    %145 = arith.cmpi eq, %arg0, %c1_i32 : i32
    %146 = arith.extui %145 : i1 to i32
    %c0_i32_69 = arith.constant 0 : i32
    %147 = arith.cmpi ne, %146, %c0_i32_69 : i32
    scf.if %147 {
      %c0_70 = arith.constant 0 : index
      %c0_71 = arith.constant 0 : index
      %148 = vector.load %arg3[%c0_70, %c0_71] : memref<2x16xf32, #tpu.memory_space<vmem>>, vector<2x16xf32>
      %cst_72 = arith.constant dense<0.000000e+00> : vector<2x32xf32>
      %149 = tpu.matmul %148, %143, %cst_72 {dimension_numbers = #tpu.dot_dimension_numbers<[1], [0], [0], [1], [0, 0, 1, 1], [], []>} : vector<2x16xf32>, vector<16x32xf32>, vector<2x32xf32> -> vector<2x32xf32>
      %c0_73 = arith.constant 0 : index
      %c0_74 = arith.constant 0 : index
      %150 = vector.load %arg18[%c0_73, %c0_74] : memref<32x32xf32, #tpu.memory_space<vmem>>, vector<32x32xf32>
      %cst_75 = arith.constant dense<0.000000e+00> : vector<2x32xf32>
      %151 = tpu.matmul %149, %150, %cst_75 {dimension_numbers = #tpu.dot_dimension_numbers<[1], [0], [0], [1], [0, 0, 1, 1], [], []>} : vector<2x32xf32>, vector<32x32xf32>, vector<2x32xf32> -> vector<2x32xf32>
      %c0_76 = arith.constant 0 : index
      %c0_77 = arith.constant 0 : index
      %152 = vector.load %arg19[%c0_76, %c0_77] : memref<1x32xf32, #tpu.memory_space<vmem>>, vector<1x32xf32>
      %153 = vector.broadcast %152 : vector<1x32xf32> to vector<2x32xf32>
      %154 = arith.addf %151, %153 : vector<2x32xf32>
      %155 = math.tanh %154 : vector<2x32xf32>
      %c0_78 = arith.constant 0 : index
      %c0_79 = arith.constant 0 : index
      %156 = vector.load %arg20[%c0_78, %c0_79] : memref<32x2xf32, #tpu.memory_space<vmem>>, vector<32x2xf32>
      %cst_80 = arith.constant dense<0.000000e+00> : vector<2x2xf32>
      %157 = tpu.matmul %155, %156, %cst_80 {dimension_numbers = #tpu.dot_dimension_numbers<[1], [0], [0], [1], [0, 0, 1, 1], [], []>} : vector<2x32xf32>, vector<32x2xf32>, vector<2x2xf32> -> vector<2x2xf32>
      %c0_81 = arith.constant 0 : index
      %c0_82 = arith.constant 0 : index
      %158 = vector.load %arg21[%c0_81, %c0_82] : memref<1x2xf32, #tpu.memory_space<vmem>>, vector<1x2xf32>
      %159 = vector.broadcast %158 : vector<1x2xf32> to vector<2x2xf32>
      %160 = arith.addf %157, %159 : vector<2x2xf32>
      %c0_83 = arith.constant 0 : index
      %c0_84 = arith.constant 0 : index
      %161 = vector.load %arg22[%c0_83, %c0_84] : memref<2x2xf32, #tpu.memory_space<vmem>>, vector<2x2xf32>
      tpu.vector_store %arg22[%c0_83, %c0_84], %160 {strides = array<i32>} : memref<2x2xf32, #tpu.memory_space<vmem>>, vector<2x2xf32>,
    } else {
    }
    return
  }
  func.func @transform_0(%arg0: i32) -> (i32, i32) {
    %c0_i32 = arith.constant 0 : i32
    %c0_i32_0 = arith.constant 0 : i32
    %c0_i32_1 = arith.constant 0 : i32
    return %c0_i32, %c0_i32_0 : i32, i32
  }
  func.func @transform_1(%arg0: i32) -> (i32, i32) {
    %c0_i32 = arith.constant 0 : i32
    %c0_i32_0 = arith.constant 0 : i32
    %c0_i32_1 = arith.constant 0 : i32
    return %c0_i32, %c0_i32_0 : i32, i32
  }
  func.func @transform_2(%arg0: i32) -> (i32, i32) {
    %c0_i32 = arith.constant 0 : i32
    %c0_i32_0 = arith.constant 0 : i32
    %c0_i32_1 = arith.constant 0 : i32
    return %c0_i32, %c0_i32_0 : i32, i32
  }
  func.func @transform_3(%arg0: i32) -> (i32, i32) {
    %c0_i32 = arith.constant 0 : i32
    %c0_i32_0 = arith.constant 0 : i32
    %c0_i32_1 = arith.constant 0 : i32
    return %c0_i32, %c0_i32_0 : i32, i32
  }
  func.func @transform_4(%arg0: i32) -> (i32, i32) {
    %c0_i32 = arith.constant 0 : i32
    %c0_i32_0 = arith.constant 0 : i32
    %c0_i32_1 = arith.constant 0 : i32
    return %c0_i32, %c0_i32_0 : i32, i32
  }
  func.func @transform_5(%arg0: i32) -> (i32, i32, i32) {
    %c0_i32 = arith.constant 0 : i32
    %c0_i32_0 = arith.constant 0 : i32
    %c0_i32_1 = arith.constant 0 : i32
    return %arg0, %c0_i32, %c0_i32_0 : i32, i32, i32
  }
  func.func @transform_6(%arg0: i32) -> (i32, i32, i32) {
    %c0_i32 = arith.constant 0 : i32
    %c0_i32_0 = arith.constant 0 : i32
    %c0_i32_1 = arith.constant 0 : i32
    return %arg0, %c0_i32, %c0_i32_0 : i32, i32, i32
  }
  func.func @transform_7(%arg0: i32) -> (i32, i32, i32) {
    %c0_i32 = arith.constant 0 : i32
    %c0_i32_0 = arith.constant 0 : i32
    %c0_i32_1 = arith.constant 0 : i32
    return %arg0, %c0_i32, %c0_i32_0 : i32, i32, i32
  }
  func.func @transform_8(%arg0: i32) -> (i32, i32, i32) {
    %c0_i32 = arith.constant 0 : i32
    %c0_i32_0 = arith.constant 0 : i32
    %c0_i32_1 = arith.constant 0 : i32
    return %arg0, %c0_i32, %c0_i32_0 : i32, i32, i32
  }
  func.func @transform_9(%arg0: i32) -> (i32, i32, i32) {
    %c0_i32 = arith.constant 0 : i32
    %c0_i32_0 = arith.constant 0 : i32
    %c0_i32_1 = arith.constant 0 : i32
    return %arg0, %c0_i32, %c0_i32_0 : i32, i32, i32
  }
  func.func @transform_10(%arg0: i32) -> (i32, i32, i32) {
    %c0_i32 = arith.constant 0 : i32
    %c0_i32_0 = arith.constant 0 : i32
    %c0_i32_1 = arith.constant 0 : i32
    return %arg0, %c0_i32, %c0_i32_0 : i32, i32, i32
  }
  func.func @transform_11(%arg0: i32) -> (i32, i32, i32) {
    %c0_i32 = arith.constant 0 : i32
    %c0_i32_0 = arith.constant 0 : i32
    %c0_i32_1 = arith.constant 0 : i32
    return %arg0, %c0_i32, %c0_i32_0 : i32, i32, i32
  }
  func.func @transform_12(%arg0: i32) -> (i32, i32, i32) {
    %c0_i32 = arith.constant 0 : i32
    %c0_i32_0 = arith.constant 0 : i32
    %c0_i32_1 = arith.constant 0 : i32
    return %arg0, %c0_i32, %c0_i32_0 : i32, i32, i32
  }
  func.func @transform_13(%arg0: i32) -> (i32, i32, i32) {
    %c0_i32 = arith.constant 0 : i32
    %c0_i32_0 = arith.constant 0 : i32
    %c0_i32_1 = arith.constant 0 : i32
    return %arg0, %c0_i32, %c0_i32_0 : i32, i32, i32
  }
  func.func @transform_14(%arg0: i32) -> (i32, i32, i32) {
    %c0_i32 = arith.constant 0 : i32
    %c0_i32_0 = arith.constant 0 : i32
    %c0_i32_1 = arith.constant 0 : i32
    return %arg0, %c0_i32, %c0_i32_0 : i32, i32, i32
  }
  func.func @transform_15(%arg0: i32) -> (i32, i32, i32) {
    %c0_i32 = arith.constant 0 : i32
    %c0_i32_0 = arith.constant 0 : i32
    %c0_i32_1 = arith.constant 0 : i32
    return %arg0, %c0_i32, %c0_i32_0 : i32, i32, i32
  }
  func.func @transform_16(%arg0: i32) -> (i32, i32, i32) {
    %c0_i32 = arith.constant 0 : i32
    %c0_i32_0 = arith.constant 0 : i32
    %c0_i32_1 = arith.constant 0 : i32
    return %arg0, %c0_i32, %c0_i32_0 : i32, i32, i32
  }
  func.func @transform_17(%arg0: i32) -> (i32, i32) {
    %c0_i32 = arith.constant 0 : i32
    %c0_i32_0 = arith.constant 0 : i32
    %c0_i32_1 = arith.constant 0 : i32
    return %c0_i32, %c0_i32_0 : i32, i32
  }
  func.func @transform_18(%arg0: i32) -> (i32, i32) {
    %c0_i32 = arith.constant 0 : i32
    %c0_i32_0 = arith.constant 0 : i32
    %c0_i32_1 = arith.constant 0 : i32
    return %c0_i32, %c0_i32_0 : i32, i32
  }
  func.func @transform_19(%arg0: i32) -> (i32, i32) {
    %c0_i32 = arith.constant 0 : i32
    %c0_i32_0 = arith.constant 0 : i32
    %c0_i32_1 = arith.constant 0 : i32
    return %c0_i32, %c0_i32_0 : i32, i32
  }
  func.func @transform_20(%arg0: i32) -> (i32, i32) {
    %c0_i32 = arith.constant 0 : i32
    %c0_i32_0 = arith.constant 0 : i32
    %c0_i32_1 = arith.constant 0 : i32
    return %c0_i32, %c0_i32_0 : i32, i32
  }
  func.func @transform_21(%arg0: i32) -> (i32, i32) {
    %c0_i32 = arith.constant 0 : i32
    %c0_i32_0 = arith.constant 0 : i32
    %c0_i32_1 = arith.constant 0 : i32
    return %c0_i32, %c0_i32_0 : i32, i32
  }
}

</mosaic_0001>

<llo_original>
// kernel: sentiment_analyzer_forward.1
$region0: #{sentiment_analyzer_forward.1}
  #allocation0 [shape = 'u32[]', space=smem, size = 0x4, offset = 0x4, fixed_abs, tag = 'smem constant byte address 0x4 - core index']
  #allocation1 [shape = 'u32[144,128]{1,0:T(1,128)}', space=vmem, size = 0x12000, scoped, tag = 'internal scratch']
  #allocation2 [shape = 'f32[16,32]{1,0:T(8,128)}', space=vmem, size = 0x2000, scoped, tag = 'scratch operand']
  %s0 = inlined_call_operand.vmem [shape: f32[16,32], index: 0, kind: input, shape index: {}]
  %s1 = inlined_call_operand.vmem [shape: f32[16,16], index: 1, kind: input, shape index: {}]
  %s2 = inlined_call_operand.vmem [shape: f32[2,16], index: 2, kind: input, shape index: {}]
  %s3 = inlined_call_operand.vmem [shape: f32[1,32], index: 3, kind: input, shape index: {}]
  %s4 = inlined_call_operand.vmem [shape: f32[1,32], index: 4, kind: input, shape index: {}]
  %s5 = inlined_call_operand.vmem [shape: f32[2,32,96], index: 5, kind: input, shape index: {}]
  %s6 = inlined_call_operand.vmem [shape: f32[2,1,96], index: 6, kind: input, shape index: {}]
  %s7 = inlined_call_operand.vmem [shape: f32[2,32,32], index: 7, kind: input, shape index: {}]
  %s8 = inlined_call_operand.vmem [shape: f32[2,1,32], index: 8, kind: input, shape index: {}]
  %s9 = inlined_call_operand.vmem [shape: f32[2,1,32], index: 9, kind: input, shape index: {}]
  %s10 = inlined_call_operand.vmem [shape: f32[2,1,32], index: 10, kind: input, shape index: {}]
  %s11 = inlined_call_operand.vmem [shape: f32[2,32,64], index: 11, kind: input, shape index: {}]
  %s12 = inlined_call_operand.vmem [shape: f32[2,1,64], index: 12, kind: input, shape index: {}]
  %s13 = inlined_call_operand.vmem [shape: f32[2,64,32], index: 13, kind: input, shape index: {}]
  %s14 = inlined_call_operand.vmem [shape: f32[2,1,32], index: 14, kind: input, shape index: {}]
  %s15 = inlined_call_operand.vmem [shape: f32[2,1,32], index: 15, kind: input, shape index: {}]
  %s16 = inlined_call_operand.vmem [shape: f32[2,1,32], index: 16, kind: input, shape index: {}]
  %s17 = inlined_call_operand.vmem [shape: f32[32,32], index: 17, kind: input, shape index: {}]
  %s18 = inlined_call_operand.vmem [shape: f32[1,32], index: 18, kind: input, shape index: {}]
  %s19 = inlined_call_operand.vmem [shape: f32[32,2], index: 19, kind: input, shape index: {}]
  %s20 = inlined_call_operand.vmem [shape: f32[1,2], index: 20, kind: input, shape index: {}]
  %s21 = inlined_call_operand.hbm [shape: f32[2,2], index: 21, kind: output, shape index: {}]
  %s22 = sld [smem:[#allocation0]]
  $region125: #{sentiment_analyzer_forward.1} parent=0
    _
  %s24 = ssub.s32 1, %s22
  %s25 = scalar_select 0, %s24, %s22
  $region1: #{sentiment_analyzer_forward.1} parent=0
    #allocation3 [shape = 'u8[1024]{0}', space=vmem, size = 0x400, scoped, tag = 'output window, operand 0, single buffered']
    #allocation4 [shape = 's32[2]{0}', space=sflag, size = 0x8, scoped, tag = 'scoped memory for sentiment_analyzer_forward.1']
    %26 = vsyncpa [#allocation4], 0
    loop: start=0, step=1, limit=4
    $region2: #{sentiment_analyzer_forward.1} parent=1 // loop_pre_header
      _
    $region3: #{sentiment_analyzer_forward.1} parent=1 // loop_header
      %s28 = sphi 0, %s32
      %p29 = scmp.ge.s32.totalorder %s28, 4
      %s36 = sphi 0, %s36
      %s38 = sphi 0, %s36
      %s39 = sphi 0, %s38
      %s53 = sphi 0, %s39
      %s57 = sphi 0, %s57
      %s59 = sphi 0, %s57
      %s60 = sphi 0, %s59
      %s74 = sphi 0, %s60
      %s78 = sphi 0, %s78
      %s80 = sphi 0, %s78
      %s81 = sphi 0, %s80
      %s95 = sphi 0, %s81
      %s99 = sphi 0, %s99
      %s101 = sphi 0, %s99
      %s102 = sphi 0, %s101
      %s116 = sphi 0, %s102
      %s120 = sphi 0, %s120
      %s122 = sphi 0, %s120
      %s123 = sphi 0, %s122
      %s137 = sphi 0, %s123
      %s143 = sphi 0, %s145
      %s146 = sphi 0, %s143
      %s147 = sphi 0, %s146
      %s163 = sphi 0, %s147
      %s169 = sphi 0, %s171
      %s172 = sphi 0, %s169
      %s173 = sphi 0, %s172
      %s189 = sphi 0, %s173
      %s195 = sphi 0, %s197
      %s198 = sphi 0, %s195
      %s199 = sphi 0, %s198
      %s215 = sphi 0, %s199
      %s221 = sphi 0, %s223
      %s224 = sphi 0, %s221
      %s225 = sphi 0, %s224
      %s241 = sphi 0, %s225
      %s247 = sphi 0, %s249
      %s250 = sphi 0, %s247
      %s251 = sphi 0, %s250
      %s267 = sphi 0, %s251
      %s273 = sphi 0, %s275
      %s276 = sphi 0, %s273
      %s277 = sphi 0, %s276
      %s293 = sphi 0, %s277
      %s299 = sphi 0, %s301
      %s302 = sphi 0, %s299
      %s303 = sphi 0, %s302
      %s319 = sphi 0, %s303
      %s325 = sphi 0, %s327
      %s328 = sphi 0, %s325
      %s329 = sphi 0, %s328
      %s345 = sphi 0, %s329
      %s351 = sphi 0, %s353
      %s354 = sphi 0, %s351
      %s355 = sphi 0, %s354
      %s371 = sphi 0, %s355
      %s377 = sphi 0, %s379
      %s380 = sphi 0, %s377
      %s381 = sphi 0, %s380
      %s397 = sphi 0, %s381
      %s403 = sphi 0, %s405
      %s406 = sphi 0, %s403
      %s407 = sphi 0, %s406
      %s423 = sphi 0, %s407
      %s429 = sphi 0, %s431
      %s432 = sphi 0, %s429
      %s433 = sphi 0, %s432
      %s449 = sphi 0, %s433
      %s453 = sphi 0, %s453
      %s455 = sphi 0, %s453
      %s456 = sphi 0, %s455
      %s470 = sphi 0, %s456
      %s474 = sphi 0, %s474
      %s476 = sphi 0, %s474
      %s477 = sphi 0, %s476
      %s491 = sphi 0, %s477
      %s495 = sphi 0, %s495
      %s497 = sphi 0, %s495
      %s498 = sphi 0, %s497
      %s512 = sphi 0, %s498
      %s516 = sphi 0, %s516
      %s518 = sphi 0, %s516
      %s519 = sphi 0, %s518
      %s533 = sphi 0, %s519
      %s537 = sphi 0, %s537
      %s539 = sphi 0, %s537
      %s540 = sphi 0, %s539
      %s554 = sphi 0, %s540
    $region4: #{sentiment_analyzer_forward.1} parent=1 // loop_header_branch
      %31 = sbr.rel (%p29) target = $region8
    $region5: #{sentiment_analyzer_forward.1} parent=1 // loop_body
      %s33 = ssub.s32 %s28, 1
      %s34 = ssub.s32 %s28, 2
      %s35 = sadd.s32 %s28, 1
      %s37 = sadd.s32 %s36, 1
      %p40 = scmp.eq.s32.totalorder %s28, 1
      %p41 = scmp.ne.s32.totalorder %s36, %s38
      %p42 = scmp.eq.s32.totalorder %s28, 0
      %p43 = por %p41, %p42
      %p44 = scmp.ne.s32.totalorder %s36, %s38
      %p45 = scmp.eq.s32.totalorder %s33, 1
      %p46 = por %p44, %p45
      %p47 = scmp.ne.s32.totalorder %s38, %s39
      %p48 = scmp.eq.s32.totalorder %s33, 0
      %p49 = por %p47, %p48
      %p50 = scmp.ne.s32.totalorder %s38, %s39
      %p51 = scmp.eq.s32.totalorder %s34, 1
      %p52 = por %p50, %p51
      %p54 = scmp.ne.s32.totalorder %s39, %s53
      %p55 = scmp.eq.s32.totalorder %s34, 0
      %p56 = por %p54, %p55
      %s58 = sadd.s32 %s57, 1
      %p61 = scmp.eq.s32.totalorder %s28, 1
      %p62 = scmp.ne.s32.totalorder %s57, %s59
      %p63 = scmp.eq.s32.totalorder %s28, 0
      %p64 = por %p62, %p63
      %p65 = scmp.ne.s32.totalorder %s57, %s59
      %p66 = scmp.eq.s32.totalorder %s33, 1
      %p67 = por %p65, %p66
      %p68 = scmp.ne.s32.totalorder %s59, %s60
      %p69 = scmp.eq.s32.totalorder %s33, 0
      %p70 = por %p68, %p69
      %p71 = scmp.ne.s32.totalorder %s59, %s60
      %p72 = scmp.eq.s32.totalorder %s34, 1
      %p73 = por %p71, %p72
      %p75 = scmp.ne.s32.totalorder %s60, %s74
      %p76 = scmp.eq.s32.totalorder %s34, 0
      %p77 = por %p75, %p76
      %s79 = sadd.s32 %s78, 1
      %p82 = scmp.eq.s32.totalorder %s28, 1
      %p83 = scmp.ne.s32.totalorder %s78, %s80
      %p84 = scmp.eq.s32.totalorder %s28, 0
      %p85 = por %p83, %p84
      %p86 = scmp.ne.s32.totalorder %s78, %s80
      %p87 = scmp.eq.s32.totalorder %s33, 1
      %p88 = por %p86, %p87
      %p89 = scmp.ne.s32.totalorder %s80, %s81
      %p90 = scmp.eq.s32.totalorder %s33, 0
      %p91 = por %p89, %p90
      %p92 = scmp.ne.s32.totalorder %s80, %s81
      %p93 = scmp.eq.s32.totalorder %s34, 1
      %p94 = por %p92, %p93
      %p96 = scmp.ne.s32.totalorder %s81, %s95
      %p97 = scmp.eq.s32.totalorder %s34, 0
      %p98 = por %p96, %p97
      %s100 = sadd.s32 %s99, 1
      %p103 = scmp.eq.s32.totalorder %s28, 1
      %p104 = scmp.ne.s32.totalorder %s99, %s101
      %p105 = scmp.eq.s32.totalorder %s28, 0
      %p106 = por %p104, %p105
      %p107 = scmp.ne.s32.totalorder %s99, %s101
      %p108 = scmp.eq.s32.totalorder %s33, 1
      %p109 = por %p107, %p108
      %p110 = scmp.ne.s32.totalorder %s101, %s102
      %p111 = scmp.eq.s32.totalorder %s33, 0
      %p112 = por %p110, %p111
      %p113 = scmp.ne.s32.totalorder %s101, %s102
      %p114 = scmp.eq.s32.totalorder %s34, 1
      %p115 = por %p113, %p114
      %p117 = scmp.ne.s32.totalorder %s102, %s116
      %p118 = scmp.eq.s32.totalorder %s34, 0
      %p119 = por %p117, %p118
      %s121 = sadd.s32 %s120, 1
      %p124 = scmp.eq.s32.totalorder %s28, 1
      %p125 = scmp.ne.s32.totalorder %s120, %s122
      %p126 = scmp.eq.s32.totalorder %s28, 0
      %p127 = por %p125, %p126
      %p128 = scmp.ne.s32.totalorder %s120, %s122
      %p129 = scmp.eq.s32.totalorder %s33, 1
      %p130 = por %p128, %p129
      %p131 = scmp.ne.s32.totalorder %s122, %s123
      %p132 = scmp.eq.s32.totalorder %s33, 0
      %p133 = por %p131, %p132
      %p134 = scmp.ne.s32.totalorder %s122, %s123
      %p135 = scmp.eq.s32.totalorder %s34, 1
      %p136 = por %p134, %p135
      %p138 = scmp.ne.s32.totalorder %s123, %s137
      %p139 = scmp.eq.s32.totalorder %s34, 0
      %p140 = por %p138, %p139
      %s141 = ssub.s32 %s28, %s35
      %p142 = scmp.eq.s32.totalorder %s141, 0
      %s144 = sadd.s32 %s143, 1
      %s145 = scalar_select %p142, %s143, %s144
      %p148 = pneg %p142
      %p149 = scmp.eq.s32.totalorder %s28, 1
      %p150 = por %p148, %p149
      %p151 = scmp.ne.s32.totalorder %s143, %s146
      %p152 = scmp.eq.s32.totalorder %s28, 0
      %p153 = por %p151, %p152
      %p154 = scmp.ne.s32.totalorder %s143, %s146
      %p155 = scmp.eq.s32.totalorder %s33, 1
      %p156 = por %p154, %p155
      %p157 = scmp.ne.s32.totalorder %s146, %s147
      %p158 = scmp.eq.s32.totalorder %s33, 0
      %p159 = por %p157, %p158
      %p160 = scmp.ne.s32.totalorder %s146, %s147
      %p161 = scmp.eq.s32.totalorder %s34, 1
      %p162 = por %p160, %p161
      %p164 = scmp.ne.s32.totalorder %s147, %s163
      %p165 = scmp.eq.s32.totalorder %s34, 0
      %p166 = por %p164, %p165
      %s167 = ssub.s32 %s28, %s35
      %p168 = scmp.eq.s32.totalorder %s167, 0
      %s170 = sadd.s32 %s169, 1
      %s171 = scalar_select %p168, %s169, %s170
      %p174 = pneg %p168
      %p175 = scmp.eq.s32.totalorder %s28, 1
      %p176 = por %p174, %p175
      %p177 = scmp.ne.s32.totalorder %s169, %s172
      %p178 = scmp.eq.s32.totalorder %s28, 0
      %p179 = por %p177, %p178
      %p180 = scmp.ne.s32.totalorder %s169, %s172
      %p181 = scmp.eq.s32.totalorder %s33, 1
      %p182 = por %p180, %p181
      %p183 = scmp.ne.s32.totalorder %s172, %s173
      %p184 = scmp.eq.s32.totalorder %s33, 0
      %p185 = por %p183, %p184
      %p186 = scmp.ne.s32.totalorder %s172, %s173
      %p187 = scmp.eq.s32.totalorder %s34, 1
      %p188 = por %p186, %p187
      %p190 = scmp.ne.s32.totalorder %s173, %s189
      %p191 = scmp.eq.s32.totalorder %s34, 0
      %p192 = por %p190, %p191
      %s193 = ssub.s32 %s28, %s35
      %p194 = scmp.eq.s32.totalorder %s193, 0
      %s196 = sadd.s32 %s195, 1
      %s197 = scalar_select %p194, %s195, %s196
      %p200 = pneg %p194
      %p201 = scmp.eq.s32.totalorder %s28, 1
      %p202 = por %p200, %p201
      %p203 = scmp.ne.s32.totalorder %s195, %s198
      %p204 = scmp.eq.s32.totalorder %s28, 0
      %p205 = por %p203, %p204
      %p206 = scmp.ne.s32.totalorder %s195, %s198
      %p207 = scmp.eq.s32.totalorder %s33, 1
      %p208 = por %p206, %p207
      %p209 = scmp.ne.s32.totalorder %s198, %s199
      %p210 = scmp.eq.s32.totalorder %s33, 0
      %p211 = por %p209, %p210
      %p212 = scmp.ne.s32.totalorder %s198, %s199
      %p213 = scmp.eq.s32.totalorder %s34, 1
      %p214 = por %p212, %p213
      %p216 = scmp.ne.s32.totalorder %s199, %s215
      %p217 = scmp.eq.s32.totalorder %s34, 0
      %p218 = por %p216, %p217
      %s219 = ssub.s32 %s28, %s35
      %p220 = scmp.eq.s32.totalorder %s219, 0
      %s222 = sadd.s32 %s221, 1
      %s223 = scalar_select %p220, %s221, %s222
      %p226 = pneg %p220
      %p227 = scmp.eq.s32.totalorder %s28, 1
      %p228 = por %p226, %p227
      %p229 = scmp.ne.s32.totalorder %s221, %s224
      %p230 = scmp.eq.s32.totalorder %s28, 0
      %p231 = por %p229, %p230
      %p232 = scmp.ne.s32.totalorder %s221, %s224
      %p233 = scmp.eq.s32.totalorder %s33, 1
      %p234 = por %p232, %p233
      %p235 = scmp.ne.s32.totalorder %s224, %s225
      %p236 = scmp.eq.s32.totalorder %s33, 0
      %p237 = por %p235, %p236
      %p238 = scmp.ne.s32.totalorder %s224, %s225
      %p239 = scmp.eq.s32.totalorder %s34, 1
      %p240 = por %p238, %p239
      %p242 = scmp.ne.s32.totalorder %s225, %s241
      %p243 = scmp.eq.s32.totalorder %s34, 0
      %p244 = por %p242, %p243
      %s245 = ssub.s32 %s28, %s35
      %p246 = scmp.eq.s32.totalorder %s245, 0
      %s248 = sadd.s32 %s247, 1
      %s249 = scalar_select %p246, %s247, %s248
      %p252 = pneg %p246
      %p253 = scmp.eq.s32.totalorder %s28, 1
      %p254 = por %p252, %p253
      %p255 = scmp.ne.s32.totalorder %s247, %s250
      %p256 = scmp.eq.s32.totalorder %s28, 0
      %p257 = por %p255, %p256
      %p258 = scmp.ne.s32.totalorder %s247, %s250
      %p259 = scmp.eq.s32.totalorder %s33, 1
      %p260 = por %p258, %p259
      %p261 = scmp.ne.s32.totalorder %s250, %s251
      %p262 = scmp.eq.s32.totalorder %s33, 0
      %p263 = por %p261, %p262
      %p264 = scmp.ne.s32.totalorder %s250, %s251
      %p265 = scmp.eq.s32.totalorder %s34, 1
      %p266 = por %p264, %p265
      %p268 = scmp.ne.s32.totalorder %s251, %s267
      %p269 = scmp.eq.s32.totalorder %s34, 0
      %p270 = por %p268, %p269
      %s271 = ssub.s32 %s28, %s35
      %p272 = scmp.eq.s32.totalorder %s271, 0
      %s274 = sadd.s32 %s273, 1
      %s275 = scalar_select %p272, %s273, %s274
      %p278 = pneg %p272
      %p279 = scmp.eq.s32.totalorder %s28, 1
      %p280 = por %p278, %p279
      %p281 = scmp.ne.s32.totalorder %s273, %s276
      %p282 = scmp.eq.s32.totalorder %s28, 0
      %p283 = por %p281, %p282
      %p284 = scmp.ne.s32.totalorder %s273, %s276
      %p285 = scmp.eq.s32.totalorder %s33, 1
      %p286 = por %p284, %p285
      %p287 = scmp.ne.s32.totalorder %s276, %s277
      %p288 = scmp.eq.s32.totalorder %s33, 0
      %p289 = por %p287, %p288
      %p290 = scmp.ne.s32.totalorder %s276, %s277
      %p291 = scmp.eq.s32.totalorder %s34, 1
      %p292 = por %p290, %p291
      %p294 = scmp.ne.s32.totalorder %s277, %s293
      %p295 = scmp.eq.s32.totalorder %s34, 0
      %p296 = por %p294, %p295
      %s297 = ssub.s32 %s28, %s35
      %p298 = scmp.eq.s32.totalorder %s297, 0
      %s300 = sadd.s32 %s299, 1
      %s301 = scalar_select %p298, %s299, %s300
      %p304 = pneg %p298
      %p305 = scmp.eq.s32.totalorder %s28, 1
      %p306 = por %p304, %p305
      %p307 = scmp.ne.s32.totalorder %s299, %s302
      %p308 = scmp.eq.s32.totalorder %s28, 0
      %p309 = por %p307, %p308
      %p310 = scmp.ne.s32.totalorder %s299, %s302
      %p311 = scmp.eq.s32.totalorder %s33, 1
      %p312 = por %p310, %p311
      %p313 = scmp.ne.s32.totalorder %s302, %s303
      %p314 = scmp.eq.s32.totalorder %s33, 0
      %p315 = por %p313, %p314
      %p316 = scmp.ne.s32.totalorder %s302, %s303
      %p317 = scmp.eq.s32.totalorder %s34, 1
      %p318 = por %p316, %p317
      %p320 = scmp.ne.s32.totalorder %s303, %s319
      %p321 = scmp.eq.s32.totalorder %s34, 0
      %p322 = por %p320, %p321
      %s323 = ssub.s32 %s28, %s35
      %p324 = scmp.eq.s32.totalorder %s323, 0
      %s326 = sadd.s32 %s325, 1
      %s327 = scalar_select %p324, %s325, %s326
      %p330 = pneg %p324
      %p331 = scmp.eq.s32.totalorder %s28, 1
      %p332 = por %p330, %p331
      %p333 = scmp.ne.s32.totalorder %s325, %s328
      %p334 = scmp.eq.s32.totalorder %s28, 0
      %p335 = por %p333, %p334
      %p336 = scmp.ne.s32.totalorder %s325, %s328
      %p337 = scmp.eq.s32.totalorder %s33, 1
      %p338 = por %p336, %p337
      %p339 = scmp.ne.s32.totalorder %s328, %s329
      %p340 = scmp.eq.s32.totalorder %s33, 0
      %p341 = por %p339, %p340
      %p342 = scmp.ne.s32.totalorder %s328, %s329
      %p343 = scmp.eq.s32.totalorder %s34, 1
      %p344 = por %p342, %p343
      %p346 = scmp.ne.s32.totalorder %s329, %s345
      %p347 = scmp.eq.s32.totalorder %s34, 0
      %p348 = por %p346, %p347
      %s349 = ssub.s32 %s28, %s35
      %p350 = scmp.eq.s32.totalorder %s349, 0
      %s352 = sadd.s32 %s351, 1
      %s353 = scalar_select %p350, %s351, %s352
      %p356 = pneg %p350
      %p357 = scmp.eq.s32.totalorder %s28, 1
      %p358 = por %p356, %p357
      %p359 = scmp.ne.s32.totalorder %s351, %s354
      %p360 = scmp.eq.s32.totalorder %s28, 0
      %p361 = por %p359, %p360
      %p362 = scmp.ne.s32.totalorder %s351, %s354
      %p363 = scmp.eq.s32.totalorder %s33, 1
      %p364 = por %p362, %p363
      %p365 = scmp.ne.s32.totalorder %s354, %s355
      %p366 = scmp.eq.s32.totalorder %s33, 0
      %p367 = por %p365, %p366
      %p368 = scmp.ne.s32.totalorder %s354, %s355
      %p369 = scmp.eq.s32.totalorder %s34, 1
      %p370 = por %p368, %p369
      %p372 = scmp.ne.s32.totalorder %s355, %s371
      %p373 = scmp.eq.s32.totalorder %s34, 0
      %p374 = por %p372, %p373
      %s375 = ssub.s32 %s28, %s35
      %p376 = scmp.eq.s32.totalorder %s375, 0
      %s378 = sadd.s32 %s377, 1
      %s379 = scalar_select %p376, %s377, %s378
      %p382 = pneg %p376
      %p383 = scmp.eq.s32.totalorder %s28, 1
      %p384 = por %p382, %p383
      %p385 = scmp.ne.s32.totalorder %s377, %s380
      %p386 = scmp.eq.s32.totalorder %s28, 0
      %p387 = por %p385, %p386
      %p388 = scmp.ne.s32.totalorder %s377, %s380
      %p389 = scmp.eq.s32.totalorder %s33, 1
      %p390 = por %p388, %p389
      %p391 = scmp.ne.s32.totalorder %s380, %s381
      %p392 = scmp.eq.s32.totalorder %s33, 0
      %p393 = por %p391, %p392
      %p394 = scmp.ne.s32.totalorder %s380, %s381
      %p395 = scmp.eq.s32.totalorder %s34, 1
      %p396 = por %p394, %p395
      %p398 = scmp.ne.s32.totalorder %s381, %s397
      %p399 = scmp.eq.s32.totalorder %s34, 0
      %p400 = por %p398, %p399
      %s401 = ssub.s32 %s28, %s35
      %p402 = scmp.eq.s32.totalorder %s401, 0
      %s404 = sadd.s32 %s403, 1
      %s405 = scalar_select %p402, %s403, %s404
      %p408 = pneg %p402
      %p409 = scmp.eq.s32.totalorder %s28, 1
      %p410 = por %p408, %p409
      %p411 = scmp.ne.s32.totalorder %s403, %s406
      %p412 = scmp.eq.s32.totalorder %s28, 0
      %p413 = por %p411, %p412
      %p414 = scmp.ne.s32.totalorder %s403, %s406
      %p415 = scmp.eq.s32.totalorder %s33, 1
      %p416 = por %p414, %p415
      %p417 = scmp.ne.s32.totalorder %s406, %s407
      %p418 = scmp.eq.s32.totalorder %s33, 0
      %p419 = por %p417, %p418
      %p420 = scmp.ne.s32.totalorder %s406, %s407
      %p421 = scmp.eq.s32.totalorder %s34, 1
      %p422 = por %p420, %p421
      %p424 = scmp.ne.s32.totalorder %s407, %s423
      %p425 = scmp.eq.s32.totalorder %s34, 0
      %p426 = por %p424, %p425
      %s427 = ssub.s32 %s28, %s35
      %p428 = scmp.eq.s32.totalorder %s427, 0
      %s430 = sadd.s32 %s429, 1
      %s431 = scalar_select %p428, %s429, %s430
      %p434 = pneg %p428
      %p435 = scmp.eq.s32.totalorder %s28, 1
      %p436 = por %p434, %p435
      %p437 = scmp.ne.s32.totalorder %s429, %s432
      %p438 = scmp.eq.s32.totalorder %s28, 0
      %p439 = por %p437, %p438
      %p440 = scmp.ne.s32.totalorder %s429, %s432
      %p441 = scmp.eq.s32.totalorder %s33, 1
      %p442 = por %p440, %p441
      %p443 = scmp.ne.s32.totalorder %s432, %s433
      %p444 = scmp.eq.s32.totalorder %s33, 0
      %p445 = por %p443, %p444
      %p446 = scmp.ne.s32.totalorder %s432, %s433
      %p447 = scmp.eq.s32.totalorder %s34, 1
      %p448 = por %p446, %p447
      %p450 = scmp.ne.s32.totalorder %s433, %s449
      %p451 = scmp.eq.s32.totalorder %s34, 0
      %p452 = por %p450, %p451
      %s454 = sadd.s32 %s453, 1
      %p457 = scmp.eq.s32.totalorder %s28, 1
      %p458 = scmp.ne.s32.totalorder %s453, %s455
      %p459 = scmp.eq.s32.totalorder %s28, 0
      %p460 = por %p458, %p459
      %p461 = scmp.ne.s32.totalorder %s453, %s455
      %p462 = scmp.eq.s32.totalorder %s33, 1
      %p463 = por %p461, %p462
      %p464 = scmp.ne.s32.totalorder %s455, %s456
      %p465 = scmp.eq.s32.totalorder %s33, 0
      %p466 = por %p464, %p465
      %p467 = scmp.ne.s32.totalorder %s455, %s456
      %p468 = scmp.eq.s32.totalorder %s34, 1
      %p469 = por %p467, %p468
      %p471 = scmp.ne.s32.totalorder %s456, %s470
      %p472 = scmp.eq.s32.totalorder %s34, 0
      %p473 = por %p471, %p472
      %s475 = sadd.s32 %s474, 1
      %p478 = scmp.eq.s32.totalorder %s28, 1
      %p479 = scmp.ne.s32.totalorder %s474, %s476
      %p480 = scmp.eq.s32.totalorder %s28, 0
      %p481 = por %p479, %p480
      %p482 = scmp.ne.s32.totalorder %s474, %s476
      %p483 = scmp.eq.s32.totalorder %s33, 1
      %p484 = por %p482, %p483
      %p485 = scmp.ne.s32.totalorder %s476, %s477
      %p486 = scmp.eq.s32.totalorder %s33, 0
      %p487 = por %p485, %p486
      %p488 = scmp.ne.s32.totalorder %s476, %s477
      %p489 = scmp.eq.s32.totalorder %s34, 1
      %p490 = por %p488, %p489
      %p492 = scmp.ne.s32.totalorder %s477, %s491
      %p493 = scmp.eq.s32.totalorder %s34, 0
      %p494 = por %p492, %p493
      %s496 = sadd.s32 %s495, 1
      %p499 = scmp.eq.s32.totalorder %s28, 1
      %p500 = scmp.ne.s32.totalorder %s495, %s497
      %p501 = scmp.eq.s32.totalorder %s28, 0
      %p502 = por %p500, %p501
      %p503 = scmp.ne.s32.totalorder %s495, %s497
      %p504 = scmp.eq.s32.totalorder %s33, 1
      %p505 = por %p503, %p504
      %p506 = scmp.ne.s32.totalorder %s497, %s498
      %p507 = scmp.eq.s32.totalorder %s33, 0
      %p508 = por %p506, %p507
      %p509 = scmp.ne.s32.totalorder %s497, %s498
      %p510 = scmp.eq.s32.totalorder %s34, 1
      %p511 = por %p509, %p510
      %p513 = scmp.ne.s32.totalorder %s498, %s512
      %p514 = scmp.eq.s32.totalorder %s34, 0
      %p515 = por %p513, %p514
      %s517 = sadd.s32 %s516, 1
      %p520 = scmp.eq.s32.totalorder %s28, 1
      %p521 = scmp.ne.s32.totalorder %s516, %s518
      %p522 = scmp.eq.s32.totalorder %s28, 0
      %p523 = por %p521, %p522
      %p524 = scmp.ne.s32.totalorder %s516, %s518
      %p525 = scmp.eq.s32.totalorder %s33, 1
      %p526 = por %p524, %p525
      %p527 = scmp.ne.s32.totalorder %s518, %s519
      %p528 = scmp.eq.s32.totalorder %s33, 0
      %p529 = por %p527, %p528
      %p530 = scmp.ne.s32.totalorder %s518, %s519
      %p531 = scmp.eq.s32.totalorder %s34, 1
      %p532 = por %p530, %p531
      %p534 = scmp.ne.s32.totalorder %s519, %s533
      %p535 = scmp.eq.s32.totalorder %s34, 0
      %p536 = por %p534, %p535
      %s538 = sadd.s32 %s537, 1
      %p541 = scmp.eq.s32.totalorder %s28, 1
      %p542 = scmp.ne.s32.totalorder %s537, %s539
      %p543 = scmp.eq.s32.totalorder %s28, 0
      %p544 = por %p542, %p543
      %p545 = scmp.ne.s32.totalorder %s537, %s539
      %p546 = scmp.eq.s32.totalorder %s33, 1
      %p547 = por %p545, %p546
      %p548 = scmp.ne.s32.totalorder %s539, %s540
      %p549 = scmp.eq.s32.totalorder %s33, 0
      %p550 = por %p548, %p549
      %p551 = scmp.ne.s32.totalorder %s539, %s540
      %p552 = scmp.eq.s32.totalorder %s34, 1
      %p553 = por %p551, %p552
      %p555 = scmp.ne.s32.totalorder %s540, %s554
      %p556 = scmp.eq.s32.totalorder %s34, 0
      %p557 = por %p555, %p556
      %p558 = scmp.le.s32.totalorder 1, %s28
      %p559 = scmp.lt.s32.totalorder %s28, 3
      %p560 = pnand %p558, %p559
      %p561 = pneg %p560
      // Predicated region
      $region9: #{sentiment_analyzer_forward.1} parent=5 // pred_check
        _
      $region10: #{sentiment_analyzer_forward.1} parent=5 // pred_check_branch
        %563 = sbr.rel (%p560) target = $region12
      $region11: #{sentiment_analyzer_forward.1} parent=5 // pred_region
        %s564 = ssub.s32 %s28, 1
        // Predicated region
        $region13: #{sentiment_analyzer_forward.1} parent=11 // pred_check
          %p565 = pneg %p49
        $region14: #{sentiment_analyzer_forward.1} parent=11 // pred_check_branch
          %567 = sbr.rel (%p565) target = $region16
        $region15: #{sentiment_analyzer_forward.1} parent=11 // pred_region
          _
        $region16: #{sentiment_analyzer_forward.1} parent=11 // pred_fallthru
          _
        // Predicated region
        $region17: #{sentiment_analyzer_forward.1} parent=11 // pred_check
          %p568 = pneg %p70
        $region18: #{sentiment_analyzer_forward.1} parent=11 // pred_check_branch
          %570 = sbr.rel (%p568) target = $region20
        $region19: #{sentiment_analyzer_forward.1} parent=11 // pred_region
          _
        $region20: #{sentiment_analyzer_forward.1} parent=11 // pred_fallthru
          _
        // Predicated region
        $region21: #{sentiment_analyzer_forward.1} parent=11 // pred_check
          %p571 = pneg %p91
        $region22: #{sentiment_analyzer_forward.1} parent=11 // pred_check_branch
          %573 = sbr.rel (%p571) target = $region24
        $region23: #{sentiment_analyzer_forward.1} parent=11 // pred_region
          _
        $region24: #{sentiment_analyzer_forward.1} parent=11 // pred_fallthru
          _
        // Predicated region
        $region25: #{sentiment_analyzer_forward.1} parent=11 // pred_check
          %p574 = pneg %p112
        $region26: #{sentiment_analyzer_forward.1} parent=11 // pred_check_branch
          %576 = sbr.rel (%p574) target = $region28
        $region27: #{sentiment_analyzer_forward.1} parent=11 // pred_region
          _
        $region28: #{sentiment_analyzer_forward.1} parent=11 // pred_fallthru
          _
        // Predicated region
        $region29: #{sentiment_analyzer_forward.1} parent=11 // pred_check
          %p577 = pneg %p133
        $region30: #{sentiment_analyzer_forward.1} parent=11 // pred_check_branch
          %579 = sbr.rel (%p577) target = $region32
        $region31: #{sentiment_analyzer_forward.1} parent=11 // pred_region
          _
        $region32: #{sentiment_analyzer_forward.1} parent=11 // pred_fallthru
          _
        // Predicated region
        $region33: #{sentiment_analyzer_forward.1} parent=11 // pred_check
          %p580 = pneg %p466
        $region34: #{sentiment_analyzer_forward.1} parent=11 // pred_check_branch
          %582 = sbr.rel (%p580) target = $region36
        $region35: #{sentiment_analyzer_forward.1} parent=11 // pred_region
          _
        $region36: #{sentiment_analyzer_forward.1} parent=11 // pred_fallthru
          _
        // Predicated region
        $region37: #{sentiment_analyzer_forward.1} parent=11 // pred_check
          %p583 = pneg %p487
        $region38: #{sentiment_analyzer_forward.1} parent=11 // pred_check_branch
          %585 = sbr.rel (%p583) target = $region40
        $region39: #{sentiment_analyzer_forward.1} parent=11 // pred_region
          _
        $region40: #{sentiment_analyzer_forward.1} parent=11 // pred_fallthru
          _
        // Predicated region
        $region41: #{sentiment_analyzer_forward.1} parent=11 // pred_check
          %p586 = pneg %p508
        $region42: #{sentiment_analyzer_forward.1} parent=11 // pred_check_branch
          %588 = sbr.rel (%p586) target = $region44
        $region43: #{sentiment_analyzer_forward.1} parent=11 // pred_region
          _
        $region44: #{sentiment_analyzer_forward.1} parent=11 // pred_fallthru
          _
        // Predicated region
        $region45: #{sentiment_analyzer_forward.1} parent=11 // pred_check
          %p589 = pneg %p529
        $region46: #{sentiment_analyzer_forward.1} parent=11 // pred_check_branch
          %591 = sbr.rel (%p589) target = $region48
        $region47: #{sentiment_analyzer_forward.1} parent=11 // pred_region
          _
        $region48: #{sentiment_analyzer_forward.1} parent=11 // pred_fallthru
          _
      $region12: #{sentiment_analyzer_forward.1} parent=5 // pred_fallthru
        _
      %p592 = scmp.lt.s32.totalorder %s28, 2
      // Predicated region
      $region49: #{sentiment_analyzer_forward.1} parent=5 // pred_check
        %p593 = pneg %p592
      $region50: #{sentiment_analyzer_forward.1} parent=5 // pred_check_branch
        %595 = sbr.rel (%p593) target = $region52
      $region51: #{sentiment_analyzer_forward.1} parent=5 // pred_region
        // Predicated region
        $region53: #{sentiment_analyzer_forward.1} parent=51 // pred_check
          %p596 = pneg %p153
        $region54: #{sentiment_analyzer_forward.1} parent=51 // pred_check_branch
          %598 = sbr.rel (%p596) target = $region56
        $region55: #{sentiment_analyzer_forward.1} parent=51 // pred_region
          %p599 = scmp.lt.s32.totalorder %s28, 1
          %s600 = scalar_select %p599, %s28, 1
          %s601 = smul.addr %s600, 4
          %s602 = smul.addr %s601, 8
          %s603 = scalar_lea.vmem %s5, %s602
        $region56: #{sentiment_analyzer_forward.1} parent=51 // pred_fallthru
          _
        // Predicated region
        $region57: #{sentiment_analyzer_forward.1} parent=51 // pred_check
          %p604 = pneg %p179
        $region58: #{sentiment_analyzer_forward.1} parent=51 // pred_check_branch
          %606 = sbr.rel (%p604) target = $region60
        $region59: #{sentiment_analyzer_forward.1} parent=51 // pred_region
          %p607 = scmp.lt.s32.totalorder %s28, 1
          %s608 = scalar_select %p607, %s28, 1
          %s609 = scalar_lea.vmem %s6, %s608
        $region60: #{sentiment_analyzer_forward.1} parent=51 // pred_fallthru
          _
        // Predicated region
        $region61: #{sentiment_analyzer_forward.1} parent=51 // pred_check
          %p610 = pneg %p205
        $region62: #{sentiment_analyzer_forward.1} parent=51 // pred_check_branch
          %612 = sbr.rel (%p610) target = $region64
        $region63: #{sentiment_analyzer_forward.1} parent=51 // pred_region
          %p613 = scmp.lt.s32.totalorder %s28, 1
          %s614 = scalar_select %p613, %s28, 1
          %s615 = smul.addr %s614, 4
          %s616 = smul.addr %s615, 8
          %s617 = scalar_lea.vmem %s7, %s616
        $region64: #{sentiment_analyzer_forward.1} parent=51 // pred_fallthru
          _
        // Predicated region
        $region65: #{sentiment_analyzer_forward.1} parent=51 // pred_check
          %p618 = pneg %p231
        $region66: #{sentiment_analyzer_forward.1} parent=51 // pred_check_branch
          %620 = sbr.rel (%p618) target = $region68
        $region67: #{sentiment_analyzer_forward.1} parent=51 // pred_region
          %p621 = scmp.lt.s32.totalorder %s28, 1
          %s622 = scalar_select %p621, %s28, 1
          %s623 = scalar_lea.vmem %s8, %s622
        $region68: #{sentiment_analyzer_forward.1} parent=51 // pred_fallthru
          _
        // Predicated region
        $region69: #{sentiment_analyzer_forward.1} parent=51 // pred_check
          %p624 = pneg %p257
        $region70: #{sentiment_analyzer_forward.1} parent=51 // pred_check_branch
          %626 = sbr.rel (%p624) target = $region72
        $region71: #{sentiment_analyzer_forward.1} parent=51 // pred_region
          %p627 = scmp.lt.s32.totalorder %s28, 1
          %s628 = scalar_select %p627, %s28, 1
          %s629 = scalar_lea.vmem %s9, %s628
        $region72: #{sentiment_analyzer_forward.1} parent=51 // pred_fallthru
          _
        // Predicated region
        $region73: #{sentiment_analyzer_forward.1} parent=51 // pred_check
          %p630 = pneg %p283
        $region74: #{sentiment_analyzer_forward.1} parent=51 // pred_check_branch
          %632 = sbr.rel (%p630) target = $region76
        $region75: #{sentiment_analyzer_forward.1} parent=51 // pred_region
          %p633 = scmp.lt.s32.totalorder %s28, 1
          %s634 = scalar_select %p633, %s28, 1
          %s635 = scalar_lea.vmem %s10, %s634
        $region76: #{sentiment_analyzer_forward.1} parent=51 // pred_fallthru
          _
        // Predicated region
        $region77: #{sentiment_analyzer_forward.1} parent=51 // pred_check
          %p636 = pneg %p309
        $region78: #{sentiment_analyzer_forward.1} parent=51 // pred_check_branch
          %638 = sbr.rel (%p636) target = $region80
        $region79: #{sentiment_analyzer_forward.1} parent=51 // pred_region
          %p639 = scmp.lt.s32.totalorder %s28, 1
          %s640 = scalar_select %p639, %s28, 1
          %s641 = smul.addr %s640, 4
          %s642 = smul.addr %s641, 8
          %s643 = scalar_lea.vmem %s11, %s642
        $region80: #{sentiment_analyzer_forward.1} parent=51 // pred_fallthru
          _
        // Predicated region
        $region81: #{sentiment_analyzer_forward.1} parent=51 // pred_check
          %p644 = pneg %p335
        $region82: #{sentiment_analyzer_forward.1} parent=51 // pred_check_branch
          %646 = sbr.rel (%p644) target = $region84
        $region83: #{sentiment_analyzer_forward.1} parent=51 // pred_region
          %p647 = scmp.lt.s32.totalorder %s28, 1
          %s648 = scalar_select %p647, %s28, 1
          %s649 = scalar_lea.vmem %s12, %s648
        $region84: #{sentiment_analyzer_forward.1} parent=51 // pred_fallthru
          _
        // Predicated region
        $region85: #{sentiment_analyzer_forward.1} parent=51 // pred_check
          %p650 = pneg %p361
        $region86: #{sentiment_analyzer_forward.1} parent=51 // pred_check_branch
          %652 = sbr.rel (%p650) target = $region88
        $region87: #{sentiment_analyzer_forward.1} parent=51 // pred_region
          %p653 = scmp.lt.s32.totalorder %s28, 1
          %s654 = scalar_select %p653, %s28, 1
          %s655 = smul.addr %s654, 8
          %s656 = smul.addr %s655, 8
          %s657 = scalar_lea.vmem %s13, %s656
        $region88: #{sentiment_analyzer_forward.1} parent=51 // pred_fallthru
          _
        // Predicated region
        $region89: #{sentiment_analyzer_forward.1} parent=51 // pred_check
          %p658 = pneg %p387
        $region90: #{sentiment_analyzer_forward.1} parent=51 // pred_check_branch
          %660 = sbr.rel (%p658) target = $region92
        $region91: #{sentiment_analyzer_forward.1} parent=51 // pred_region
          %p661 = scmp.lt.s32.totalorder %s28, 1
          %s662 = scalar_select %p661, %s28, 1
          %s663 = scalar_lea.vmem %s14, %s662
        $region92: #{sentiment_analyzer_forward.1} parent=51 // pred_fallthru
          _
        // Predicated region
        $region93: #{sentiment_analyzer_forward.1} parent=51 // pred_check
          %p664 = pneg %p413
        $region94: #{sentiment_analyzer_forward.1} parent=51 // pred_check_branch
          %666 = sbr.rel (%p664) target = $region96
        $region95: #{sentiment_analyzer_forward.1} parent=51 // pred_region
          %p667 = scmp.lt.s32.totalorder %s28, 1
          %s668 = scalar_select %p667, %s28, 1
          %s669 = scalar_lea.vmem %s15, %s668
        $region96: #{sentiment_analyzer_forward.1} parent=51 // pred_fallthru
          _
        // Predicated region
        $region97: #{sentiment_analyzer_forward.1} parent=51 // pred_check
          %p670 = pneg %p439
        $region98: #{sentiment_analyzer_forward.1} parent=51 // pred_check_branch
          %672 = sbr.rel (%p670) target = $region100
        $region99: #{sentiment_analyzer_forward.1} parent=51 // pred_region
          %p673 = scmp.lt.s32.totalorder %s28, 1
          %s674 = scalar_select %p673, %s28, 1
          %s675 = scalar_lea.vmem %s16, %s674
        $region100: #{sentiment_analyzer_forward.1} parent=51 // pred_fallthru
          _
      $region52: #{sentiment_analyzer_forward.1} parent=5 // pred_fallthru
        _
      %p676 = scmp.le.s32.totalorder 1, %s28
      %p677 = scmp.lt.s32.totalorder %s28, 3
      %p678 = pnand %p676, %p677
      %p679 = pneg %p678
      // Predicated region
      $region101: #{sentiment_analyzer_forward.1} parent=5 // pred_check
        _
      $region102: #{sentiment_analyzer_forward.1} parent=5 // pred_check_branch
        %681 = sbr.rel (%p678) target = $region104
      $region103: #{sentiment_analyzer_forward.1} parent=5 // pred_region
        %s682 = ssub.s32 %s28, 1
        %p683 = pneg %p49
        %p684 = pneg %p46
        %p685 = pneg %p70
        %p686 = pneg %p67
        %p687 = pneg %p91
        %p688 = pneg %p88
        %p689 = pneg %p112
        %p690 = pneg %p109
        %p691 = pneg %p133
        %p692 = pneg %p130
        %p693 = scmp.lt.s32.totalorder %s33, 1
        %s694 = scalar_select %p693, %s33, 1
        %s695 = smul.addr %s694, 4
        %s696 = smul.addr %s695, 8
        %s697 = scalar_lea.vmem %s5, %s696
        %p698 = pneg %p159
        %p699 = pneg %p156
        %p700 = scmp.lt.s32.totalorder %s33, 1
        %s701 = scalar_select %p700, %s33, 1
        %s702 = scalar_lea.vmem %s6, %s701
        %p703 = pneg %p185
        %p704 = pneg %p182
        %p705 = scmp.lt.s32.totalorder %s33, 1
        %s706 = scalar_select %p705, %s33, 1
        %s707 = smul.addr %s706, 4
        %s708 = smul.addr %s707, 8
        %s709 = scalar_lea.vmem %s7, %s708
        %p710 = pneg %p211
        %p711 = pneg %p208
        %p712 = scmp.lt.s32.totalorder %s33, 1
        %s713 = scalar_select %p712, %s33, 1
        %s714 = scalar_lea.vmem %s8, %s713
        %p715 = pneg %p237
        %p716 = pneg %p234
        %p717 = scmp.lt.s32.totalorder %s33, 1
        %s718 = scalar_select %p717, %s33, 1
        %s719 = scalar_lea.vmem %s9, %s718
        %p720 = pneg %p263
        %p721 = pneg %p260
        %p722 = scmp.lt.s32.totalorder %s33, 1
        %s723 = scalar_select %p722, %s33, 1
        %s724 = scalar_lea.vmem %s10, %s723
        %p725 = pneg %p289
        %p726 = pneg %p286
        %p727 = scmp.lt.s32.totalorder %s33, 1
        %s728 = scalar_select %p727, %s33, 1
        %s729 = smul.addr %s728, 4
        %s730 = smul.addr %s729, 8
        %s731 = scalar_lea.vmem %s11, %s730
        %p732 = pneg %p315
        %p733 = pneg %p312
        %p734 = scmp.lt.s32.totalorder %s33, 1
        %s735 = scalar_select %p734, %s33, 1
        %s736 = scalar_lea.vmem %s12, %s735
        %p737 = pneg %p341
        %p738 = pneg %p338
        %p739 = scmp.lt.s32.totalorder %s33, 1
        %s740 = scalar_select %p739, %s33, 1
        %s741 = smul.addr %s740, 8
        %s742 = smul.addr %s741, 8
        %s743 = scalar_lea.vmem %s13, %s742
        %p744 = pneg %p367
        %p745 = pneg %p364
        %p746 = scmp.lt.s32.totalorder %s33, 1
        %s747 = scalar_select %p746, %s33, 1
        %s748 = scalar_lea.vmem %s14, %s747
        %p749 = pneg %p393
        %p750 = pneg %p390
        %p751 = scmp.lt.s32.totalorder %s33, 1
        %s752 = scalar_select %p751, %s33, 1
        %s753 = scalar_lea.vmem %s15, %s752
        %p754 = pneg %p419
        %p755 = pneg %p416
        %p756 = scmp.lt.s32.totalorder %s33, 1
        %s757 = scalar_select %p756, %s33, 1
        %s758 = scalar_lea.vmem %s16, %s757
        %p759 = pneg %p445
        %p760 = pneg %p442
        %p761 = pneg %p466
        %p762 = pneg %p463
        %p763 = pneg %p487
        %p764 = pneg %p484
        %p765 = pneg %p508
        %p766 = pneg %p505
        %p767 = pneg %p529
        %p768 = pneg %p526
        %p769 = pneg %p550
        %p770 = pneg %p547
        %p771 = scmp.lt.s32.totalorder %s33, 1
        %s772 = scalar_select %p771, %s33, 1
        %s773 = smul.addr %s772, 4
        %s774 = smul.addr %s773, 8
        %s775 = scalar_lea.vmem %s5, %s774
        %p776 = scmp.lt.s32.totalorder %s33, 1
        %s777 = scalar_select %p776, %s33, 1
        %s778 = scalar_lea.vmem %s6, %s777
        %p779 = scmp.lt.s32.totalorder %s33, 1
        %s780 = scalar_select %p779, %s33, 1
        %s781 = smul.addr %s780, 4
        %s782 = smul.addr %s781, 8
        %s783 = scalar_lea.vmem %s7, %s782
        %p784 = scmp.lt.s32.totalorder %s33, 1
        %s785 = scalar_select %p784, %s33, 1
        %s786 = scalar_lea.vmem %s8, %s785
        %p787 = scmp.lt.s32.totalorder %s33, 1
        %s788 = scalar_select %p787, %s33, 1
        %s789 = scalar_lea.vmem %s9, %s788
        %p790 = scmp.lt.s32.totalorder %s33, 1
        %s791 = scalar_select %p790, %s33, 1
        %s792 = scalar_lea.vmem %s10, %s791
        %p793 = scmp.lt.s32.totalorder %s33, 1
        %s794 = scalar_select %p793, %s33, 1
        %s795 = smul.addr %s794, 4
        %s796 = smul.addr %s795, 8
        %s797 = scalar_lea.vmem %s11, %s796
        %p798 = scmp.lt.s32.totalorder %s33, 1
        %s799 = scalar_select %p798, %s33, 1
        %s800 = scalar_lea.vmem %s12, %s799
        %p801 = scmp.lt.s32.totalorder %s33, 1
        %s802 = scalar_select %p801, %s33, 1
        %s803 = smul.addr %s802, 8
        %s804 = smul.addr %s803, 8
        %s805 = scalar_lea.vmem %s13, %s804
        %p806 = scmp.lt.s32.totalorder %s33, 1
        %s807 = scalar_select %p806, %s33, 1
        %s808 = scalar_lea.vmem %s14, %s807
        %p809 = scmp.lt.s32.totalorder %s33, 1
        %s810 = scalar_select %p809, %s33, 1
        %s811 = scalar_lea.vmem %s15, %s810
        %p812 = scmp.lt.s32.totalorder %s33, 1
        %s813 = scalar_select %p812, %s33, 1
        %s814 = scalar_lea.vmem %s16, %s813
        %p815 = scmp.eq.s32.totalorder %s33, 0
        // Predicated region
        $region105: #{sentiment_analyzer_forward.1} parent=103 // pred_check
          %p816 = pneg %p815
        $region106: #{sentiment_analyzer_forward.1} parent=103 // pred_check_branch
          %818 = sbr.rel (%p816) target = $region108
        $region107: #{sentiment_analyzer_forward.1} parent=103 // pred_region
          %v819 = vld [vmem:[%s0] sm:$0xff]
          %v820 = vld [vmem:[%s0 + $0x8] sm:$0xff]
          %v821 = vld [vmem:[%s3] sm:$0x1]
          %v822 = vld [vmem:[%s4] sm:$0x1]
          %vm823 = vcmask 261120
          %v824 = vsel %vm823, %v819, 0.0
          %825 = vadd.xlane.f32.xlu0 %v824
          %v826 = vpop.xlane.xlu0 %825
          %v827 = vsel %vm823, %v820, 0.0
          %828 = vadd.xlane.f32.xlu0 %v827
          %v829 = vpop.xlane.xlu0 %828
          %v830 = vrcp.pop 32.0
          %v831 = vmul.f32 %v826, %v830
          %v832 = vmul.f32 %v829, %v830
          %v833 = vsub.f32 %v819, %v831
          %v834 = vsub.f32 %v820, %v832
          %v835 = vmul.f32 %v833, %v833
          %v836 = vmul.f32 %v834, %v834
          %v837 = vsel %vm823, %v835, 0.0
          %838 = vadd.xlane.f32.xlu0 %v837
          %v839 = vpop.xlane.xlu0 %838
          %v840 = vsel %vm823, %v836, 0.0
          %841 = vadd.xlane.f32.xlu0 %v840
          %v842 = vpop.xlane.xlu0 %841
          %v843 = vmul.f32 %v839, %v830
          %v844 = vmul.f32 %v842, %v830
          %v845 = vadd.f32 %v843, 1e-12
          %v846 = vadd.f32 %v844, 1e-12
          %v847 = vrsqrt.pop %v845
          %v848 = vrsqrt.pop %v846
          %v849 = vmul.f32 %v833, %v847
          %v850 = vmul.f32 %v834, %v848
          %v852 = vlaneseq
          %v853 = vshrl.u32 %v852, 7
          %v854 = vsub.s32 0, %v853
          %v855 = vrot.slane %v821, %v854
          %v857 = vmul.f32 %v849, %v855
          %v858 = vmul.f32 %v850, %v855
          %v860 = vlaneseq
          %v861 = vshrl.u32 %v860, 7
          %v862 = vsub.s32 0, %v861
          %v863 = vrot.slane %v822, %v862
          %v865 = vadd.f32 %v857, %v863
          %v866 = vadd.f32 %v858, %v863
          %867 = vst.msk [vmem:[#allocation2] sm:$0xff] %vm823, %v865
          %868 = vst.msk [vmem:[#allocation2 + $0x8] sm:$0xff] %vm823, %v866
        $region108: #{sentiment_analyzer_forward.1} parent=103 // pred_fallthru
          _
        %v869 = vld [vmem:[#allocation2] sm:$0xff]
        %v870 = vld [vmem:[#allocation2 + $0x8] sm:$0xff]
        %v871 = vld [vmem:[%s1] sm:$0xff]
        %v872 = vld [vmem:[%s1 + $0x8] sm:$0xff]
        %v873 = vld [vmem:[%s775] sm:$0xff]
        %v874 = vld [vmem:[%s775 + $0x8] sm:$0xff]
        %v875 = vld [vmem:[%s775 + $0x10] sm:$0xff]
        %v876 = vld [vmem:[%s775 + $0x18] sm:$0xff]
        %v877 = vld [vmem:[%s778] sm:$0x1]
        %v879 = vlaneseq
        %v880 = vshrl.u32 %v879, 7
        %v881 = vsub.s32 0, %v880
        %v882 = vrot.slane %v877, %v881
        %vm884 = vcmask 261120
        %v886 = vsel %vm884, %v869, 0
        %v889 = vsel %vm884, %v870, 0
        %891 = vmatprep.subr.mxu0 0.0
        %892 = vmatpush1.msra.mxu0 %v873
        %893 = vmatprep.subr.mxu0 0.0
        %894 = vmatpush1.msra.mxu0 %v874
        %895 = vmatprep.subr.mxu0 0.0
        %896 = vmatpush1.msra.mxu0 %v875
        %897 = vmatprep.subr.mxu0 0.0
        %898 = vmatpush1.msra.mxu0 %v876
        %899 = vmatprep.subr.mxu0 0.0
        %900 = vmatpush1.msra.mxu0 0.0
        %901 = vmatprep.subr.mxu0 0.0
        %902 = vmatpush1.msra.mxu0 0.0
        %903 = vmatprep.subr.mxu0 0.0
        %904 = vmatpush1.msra.mxu0 0.0
        %905 = vmatprep.subr.mxu0 0.0
        %906 = vmatpush1.msra.mxu0 0.0
        %907 = vmatprep.subr.mxu0 0.0
        %908 = vmatpush1.msra.mxu0 0.0
        %909 = vmatprep.subr.mxu0 0.0
        %910 = vmatpush1.msra.mxu0 0.0
        %911 = vmatprep.subr.mxu0 0.0
        %912 = vmatpush1.msra.mxu0 0.0
        %913 = vmatprep.subr.mxu0 0.0
        %914 = vmatpush1.msra.mxu0 0.0
        %915 = vmatprep.subr.mxu0 0.0
        %916 = vmatpush1.msra.mxu0 0.0
        %917 = vmatprep.subr.mxu0 0.0
        %918 = vmatpush1.msra.mxu0 0.0
        %919 = vmatprep.subr.mxu0 0.0
        %920 = vmatpush1.msra.mxu0 0.0
        %921 = vmatprep.subr.mxu0 0.0
        %922 = vmatpush1.msra.mxu0 0.0
        %923 = vmatprep.subr.mxu0 0.0
        %924 = vmatpush1.msra.mxu0 0.0
        %925 = vmatprep.subr.mxu0 0.0
        %926 = vmatpush1.msra.mxu0 0.0
        %927 = vmatprep.subr.mxu0 0.0
        %928 = vmatpush1.msra.mxu0 0.0
        %929 = vmatprep.subr.mxu0 0.0
        %930 = vmatpush1.msra.mxu0 0.0
        %931 = vmatprep.subr.mxu0 0.0
        %932 = vmatpush1.msra.mxu0 0.0
        %933 = vmatprep.subr.mxu0 0.0
        %934 = vmatpush1.msra.mxu0 0.0
        %935 = vmatprep.subr.mxu0 0.0
        %936 = vmatpush1.msra.mxu0 0.0
        %937 = vmatprep.subr.mxu0 0.0
        %938 = vmatpush1.msra.mxu0 0.0
        %939 = vmatprep.subr.mxu0 0.0
        %940 = vmatpush1.msra.mxu0 0.0
        %941 = vmatprep.subr.mxu0 0.0
        %942 = vmatpush1.msra.mxu0 0.0
        %943 = vmatprep.subr.mxu0 0.0
        %944 = vmatpush1.msra.mxu0 0.0
        %945 = vmatprep.subr.mxu0 0.0
        %946 = vmatpush1.msra.mxu0 0.0
        %947 = vmatprep.subr.mxu0 0.0
        %948 = vmatpush1.msra.mxu0 0.0
        %949 = vmatprep.subr.mxu0 0.0
        %950 = vmatpush1.msra.mxu0 0.0
        %951 = vmatprep.subr.mxu0 0.0
        %952 = vmatpush1.msra.mxu0 0.0
        %953 = vmatprep.subr.mxu0 0.0
        %954 = vmatpush1.msra.mxu0 0.0
        %955 = vmatprep.mubr.f32.mxu0 0.0
        %956 = vmatmul.mubr.f32.gmra.mrb[0].mxu0 %v886
        %v957 = vpop.f32.mrb[0].mxu0
        %v958 = vadd.f32 %v882, %v957
        %v959 = vpop.f32.mrb[0].mxu0
        %960 = vmatprep.mubr.f32.mxu0 0.0
        %961 = vmatmul.mubr.f32.gmra.mrb[0].mxu0 %v889
        %v962 = vpop.f32.mrb[0].mxu0
        %v963 = vadd.f32 %v882, %v962
        %v964 = vpop.f32.mrb[0].mxu0
        %965 = vdwg.mxu0
        %v966 = vld [vmem:[%s783] sm:$0xff]
        %v967 = vld [vmem:[%s783 + $0x8] sm:$0xff]
        %v968 = vld [vmem:[%s783 + $0x10] sm:$0xff]
        %v969 = vld [vmem:[%s783 + $0x18] sm:$0xff]
        %972 = vrot.lane.b32.xlu0 %v958, 96
        %v973 = vpop.permute.xlu0 %972
        %974 = vrot.lane.b32.xlu0 %v963, 96
        %v975 = vpop.permute.xlu0 %974
        %vm976 = vcmask 130048
        %v977 = vsel %vm976, %v958, 0
        %v979 = vsel %vm976, %v963, 0
        %v981 = vsel %vm976, %v973, 0
        %v983 = vsel %vm976, %v975, 0
        %985 = vmatprep.subr.mxu0 0.0
        %986 = vmatpush1.xpose.msra.mxu0 %v981
        %987 = vmatprep.subr.mxu0 0.0
        %988 = vmatpush1.xpose.msra.mxu0 %v983
        %989 = vmatprep.subr.mxu0 0.0
        %990 = vmatpush1.xpose.msra.mxu0 0.0
        %991 = vmatprep.subr.mxu0 0.0
        %992 = vmatpush1.xpose.msra.mxu0 0.0
        %993 = vmatprep.subr.mxu0 0.0
        %994 = vmatpush1.xpose.msra.mxu0 0.0
        %995 = vmatprep.subr.mxu0 0.0
        %996 = vmatpush1.xpose.msra.mxu0 0.0
        %997 = vmatprep.subr.mxu0 0.0
        %998 = vmatpush1.xpose.msra.mxu0 0.0
        %999 = vmatprep.subr.mxu0 0.0
        %1000 = vmatpush1.xpose.msra.mxu0 0.0
        %1001 = vmatprep.subr.mxu0 0.0
        %1002 = vmatpush1.xpose.msra.mxu0 0.0
        %1003 = vmatprep.subr.mxu0 0.0
        %1004 = vmatpush1.xpose.msra.mxu0 0.0
        %1005 = vmatprep.subr.mxu0 0.0
        %1006 = vmatpush1.xpose.msra.mxu0 0.0
        %1007 = vmatprep.subr.mxu0 0.0
        %1008 = vmatpush1.xpose.msra.mxu0 0.0
        %1009 = vmatprep.subr.mxu0 0.0
        %1010 = vmatpush1.xpose.msra.mxu0 0.0
        %1011 = vmatprep.subr.mxu0 0.0
        %1012 = vmatpush1.xpose.msra.mxu0 0.0
        %1013 = vmatprep.subr.mxu0 0.0
        %1014 = vmatpush1.xpose.msra.mxu0 0.0
        %1015 = vmatprep.subr.mxu0 0.0
        %1016 = vmatpush1.xpose.msra.mxu0 0.0
        %1017 = vmatprep.subr.mxu0 0.0
        %1018 = vmatpush1.xpose.msra.mxu0 0.0
        %1019 = vmatprep.subr.mxu0 0.0
        %1020 = vmatpush1.xpose.msra.mxu0 0.0
        %1021 = vmatprep.subr.mxu0 0.0
        %1022 = vmatpush1.xpose.msra.mxu0 0.0
        %1023 = vmatprep.subr.mxu0 0.0
        %1024 = vmatpush1.xpose.msra.mxu0 0.0
        %1025 = vmatprep.subr.mxu0 0.0
        %1026 = vmatpush1.xpose.msra.mxu0 0.0
        %1027 = vmatprep.subr.mxu0 0.0
        %1028 = vmatpush1.xpose.msra.mxu0 0.0
        %1029 = vmatprep.subr.mxu0 0.0
        %1030 = vmatpush1.xpose.msra.mxu0 0.0
        %1031 = vmatprep.subr.mxu0 0.0
        %1032 = vmatpush1.xpose.msra.mxu0 0.0
        %1033 = vmatprep.subr.mxu0 0.0
        %1034 = vmatpush1.xpose.msra.mxu0 0.0
        %1035 = vmatprep.subr.mxu0 0.0
        %1036 = vmatpush1.xpose.msra.mxu0 0.0
        %1037 = vmatprep.subr.mxu0 0.0
        %1038 = vmatpush1.xpose.msra.mxu0 0.0
        %1039 = vmatprep.subr.mxu0 0.0
        %1040 = vmatpush1.xpose.msra.mxu0 0.0
        %1041 = vmatprep.subr.mxu0 0.0
        %1042 = vmatpush1.xpose.msra.mxu0 0.0
        %1043 = vmatprep.subr.mxu0 0.0
        %1044 = vmatpush1.xpose.msra.mxu0 0.0
        %1045 = vmatprep.subr.mxu0 0.0
        %1046 = vmatpush1.xpose.msra.mxu0 0.0
        %1047 = vmatprep.subr.mxu0 0.0
        %1048 = vmatpush1.xpose.msra.mxu0 0.0
        %1049 = vmatprep.mubr.f32.mxu0 0.0
        %1050 = vmatmul.mubr.f32.gmra.mrb[0].mxu0 %v977
        %v1051 = vpop.f32.mrb[0].mxu0
        %v1052 = vadd.f32 %v871, %v1051
        %v1053 = vpop.f32.mrb[0].mxu0
        %1054 = vmatprep.mubr.f32.mxu0 0.0
        %1055 = vmatmul.mubr.f32.gmra.mrb[0].mxu0 %v979
        %v1056 = vpop.f32.mrb[0].mxu0
        %v1057 = vadd.f32 %v872, %v1056
        %v1058 = vpop.f32.mrb[0].mxu0
        %1059 = vdwg.mxu0
        %v1060 = vsel %vm976, %v1052, -inf
        %1061 = vmax.xlane.f32.xlu0 %v1060
        %v1062 = vpop.xlane.xlu0 %1061
        %v1063 = vsel %vm976, %v1057, -inf
        %1064 = vmax.xlane.f32.xlu0 %v1063
        %v1065 = vpop.xlane.xlu0 %1064
        %v1066 = vsub.f32 %v1052, %v1062
        %v1067 = vsub.f32 %v1057, %v1065
        %v1068 = vmul.f32 %v1066, 1.442695
        %v1069 = vpow.pop %v1068
        %v1070 = vmul.f32 %v1067, 1.442695
        %v1071 = vpow.pop %v1070
        %v1072 = vsel %vm976, %v1069, 0.0
        %1073 = vadd.xlane.f32.xlu0 %v1072
        %v1074 = vpop.xlane.xlu0 %1073
        %v1075 = vsel %vm976, %v1071, 0.0
        %1076 = vadd.xlane.f32.xlu0 %v1075
        %v1077 = vpop.xlane.xlu0 %1076
        %v1078 = vrcp.pop %v1074
        %v1079 = vrcp.pop %v1077
        %v1080 = vmul.f32 %v1069, %v1078
        %v1081 = vmul.f32 %v1071, %v1079
        %1082 = vrot.lane.b32.xlu0 %v958, 64
        %v1083 = vpop.permute.xlu0 %1082
        %1084 = vrot.lane.b32.xlu0 %v963, 64
        %v1085 = vpop.permute.xlu0 %1084
        %v1089 = vsel %vm976, %v1080, 0
        %v1092 = vsel %vm976, %v1081, 0
        %1094 = vmatprep.subr.mxu0 0.0
        %1095 = vmatpush1.msra.mxu0 %v1083
        %1096 = vmatprep.subr.mxu0 0.0
        %1097 = vmatpush1.msra.mxu0 %v1085
        %1098 = vmatprep.subr.mxu0 0.0
        %1099 = vmatpush1.msra.mxu0 0.0
        %1100 = vmatprep.subr.mxu0 0.0
        %1101 = vmatpush1.msra.mxu0 0.0
        %1102 = vmatprep.subr.mxu0 0.0
        %1103 = vmatpush1.msra.mxu0 0.0
        %1104 = vmatprep.subr.mxu0 0.0
        %1105 = vmatpush1.msra.mxu0 0.0
        %1106 = vmatprep.subr.mxu0 0.0
        %1107 = vmatpush1.msra.mxu0 0.0
        %1108 = vmatprep.subr.mxu0 0.0
        %1109 = vmatpush1.msra.mxu0 0.0
        %1110 = vmatprep.subr.mxu0 0.0
        %1111 = vmatpush1.msra.mxu0 0.0
        %1112 = vmatprep.subr.mxu0 0.0
        %1113 = vmatpush1.msra.mxu0 0.0
        %1114 = vmatprep.subr.mxu0 0.0
        %1115 = vmatpush1.msra.mxu0 0.0
        %1116 = vmatprep.subr.mxu0 0.0
        %1117 = vmatpush1.msra.mxu0 0.0
        %1118 = vmatprep.subr.mxu0 0.0
        %1119 = vmatpush1.msra.mxu0 0.0
        %1120 = vmatprep.subr.mxu0 0.0
        %1121 = vmatpush1.msra.mxu0 0.0
        %1122 = vmatprep.subr.mxu0 0.0
        %1123 = vmatpush1.msra.mxu0 0.0
        %1124 = vmatprep.subr.mxu0 0.0
        %1125 = vmatpush1.msra.mxu0 0.0
        %1126 = vmatprep.subr.mxu0 0.0
        %1127 = vmatpush1.msra.mxu0 0.0
        %1128 = vmatprep.subr.mxu0 0.0
        %1129 = vmatpush1.msra.mxu0 0.0
        %1130 = vmatprep.subr.mxu0 0.0
        %1131 = vmatpush1.msra.mxu0 0.0
        %1132 = vmatprep.subr.mxu0 0.0
        %1133 = vmatpush1.msra.mxu0 0.0
        %1134 = vmatprep.subr.mxu0 0.0
        %1135 = vmatpush1.msra.mxu0 0.0
        %1136 = vmatprep.subr.mxu0 0.0
        %1137 = vmatpush1.msra.mxu0 0.0
        %1138 = vmatprep.subr.mxu0 0.0
        %1139 = vmatpush1.msra.mxu0 0.0
        %1140 = vmatprep.subr.mxu0 0.0
        %1141 = vmatpush1.msra.mxu0 0.0
        %1142 = vmatprep.subr.mxu0 0.0
        %1143 = vmatpush1.msra.mxu0 0.0
        %1144 = vmatprep.subr.mxu0 0.0
        %1145 = vmatpush1.msra.mxu0 0.0
        %1146 = vmatprep.subr.mxu0 0.0
        %1147 = vmatpush1.msra.mxu0 0.0
        %1148 = vmatprep.subr.mxu0 0.0
        %1149 = vmatpush1.msra.mxu0 0.0
        %1150 = vmatprep.subr.mxu0 0.0
        %1151 = vmatpush1.msra.mxu0 0.0
        %1152 = vmatprep.subr.mxu0 0.0
        %1153 = vmatpush1.msra.mxu0 0.0
        %1154 = vmatprep.subr.mxu0 0.0
        %1155 = vmatpush1.msra.mxu0 0.0
        %1156 = vmatprep.subr.mxu0 0.0
        %1157 = vmatpush1.msra.mxu0 0.0
        %1158 = vmatprep.mubr.f32.mxu0 0.0
        %1159 = vmatmul.mubr.f32.gmra.mrb[0].mxu0 %v1089
        %v1160 = vpop.f32.mrb[0].mxu0
        %v1161 = vadd.f32 0.0, %v1160
        %v1162 = vpop.f32.mrb[0].mxu0
        %1163 = vmatprep.mubr.f32.mxu0 0.0
        %1164 = vmatmul.mubr.f32.gmra.mrb[0].mxu0 %v1092
        %v1165 = vpop.f32.mrb[0].mxu0
        %v1166 = vadd.f32 0.0, %v1165
        %v1167 = vpop.f32.mrb[0].mxu0
        %1168 = vdwg.mxu0
        %1169 = vrot.lane.b32.xlu0 %v958, 112
        %v1170 = vpop.permute.xlu0 %1169
        %1171 = vrot.lane.b32.xlu0 %v963, 112
        %v1172 = vpop.permute.xlu0 %1171
        %1173 = vrot.lane.b32.xlu0 %v958, 80
        %v1174 = vpop.permute.xlu0 %1173
        %1175 = vrot.lane.b32.xlu0 %v963, 80
        %v1176 = vpop.permute.xlu0 %1175
        %v1177 = vsel %vm976, %v1170, 0
        %v1179 = vsel %vm976, %v1172, 0
        %v1181 = vsel %vm976, %v1174, 0
        %v1183 = vsel %vm976, %v1176, 0
        %1185 = vmatprep.subr.mxu0 0.0
        %1186 = vmatpush1.xpose.msra.mxu0 %v1181
        %1187 = vmatprep.subr.mxu0 0.0
        %1188 = vmatpush1.xpose.msra.mxu0 %v1183
        %1189 = vmatprep.subr.mxu0 0.0
        %1190 = vmatpush1.xpose.msra.mxu0 0.0
        %1191 = vmatprep.subr.mxu0 0.0
        %1192 = vmatpush1.xpose.msra.mxu0 0.0
        %1193 = vmatprep.subr.mxu0 0.0
        %1194 = vmatpush1.xpose.msra.mxu0 0.0
        %1195 = vmatprep.subr.mxu0 0.0
        %1196 = vmatpush1.xpose.msra.mxu0 0.0
        %1197 = vmatprep.subr.mxu0 0.0
        %1198 = vmatpush1.xpose.msra.mxu0 0.0
        %1199 = vmatprep.subr.mxu0 0.0
        %1200 = vmatpush1.xpose.msra.mxu0 0.0
        %1201 = vmatprep.subr.mxu0 0.0
        %1202 = vmatpush1.xpose.msra.mxu0 0.0
        %1203 = vmatprep.subr.mxu0 0.0
        %1204 = vmatpush1.xpose.msra.mxu0 0.0
        %1205 = vmatprep.subr.mxu0 0.0
        %1206 = vmatpush1.xpose.msra.mxu0 0.0
        %1207 = vmatprep.subr.mxu0 0.0
        %1208 = vmatpush1.xpose.msra.mxu0 0.0
        %1209 = vmatprep.subr.mxu0 0.0
        %1210 = vmatpush1.xpose.msra.mxu0 0.0
        %1211 = vmatprep.subr.mxu0 0.0
        %1212 = vmatpush1.xpose.msra.mxu0 0.0
        %1213 = vmatprep.subr.mxu0 0.0
        %1214 = vmatpush1.xpose.msra.mxu0 0.0
        %1215 = vmatprep.subr.mxu0 0.0
        %1216 = vmatpush1.xpose.msra.mxu0 0.0
        %1217 = vmatprep.subr.mxu0 0.0
        %1218 = vmatpush1.xpose.msra.mxu0 0.0
        %1219 = vmatprep.subr.mxu0 0.0
        %1220 = vmatpush1.xpose.msra.mxu0 0.0
        %1221 = vmatprep.subr.mxu0 0.0
        %1222 = vmatpush1.xpose.msra.mxu0 0.0
        %1223 = vmatprep.subr.mxu0 0.0
        %1224 = vmatpush1.xpose.msra.mxu0 0.0
        %1225 = vmatprep.subr.mxu0 0.0
        %1226 = vmatpush1.xpose.msra.mxu0 0.0
        %1227 = vmatprep.subr.mxu0 0.0
        %1228 = vmatpush1.xpose.msra.mxu0 0.0
        %1229 = vmatprep.subr.mxu0 0.0
        %1230 = vmatpush1.xpose.msra.mxu0 0.0
        %1231 = vmatprep.subr.mxu0 0.0
        %1232 = vmatpush1.xpose.msra.mxu0 0.0
        %1233 = vmatprep.subr.mxu0 0.0
        %1234 = vmatpush1.xpose.msra.mxu0 0.0
        %1235 = vmatprep.subr.mxu0 0.0
        %1236 = vmatpush1.xpose.msra.mxu0 0.0
        %1237 = vmatprep.subr.mxu0 0.0
        %1238 = vmatpush1.xpose.msra.mxu0 0.0
        %1239 = vmatprep.subr.mxu0 0.0
        %1240 = vmatpush1.xpose.msra.mxu0 0.0
        %1241 = vmatprep.subr.mxu0 0.0
        %1242 = vmatpush1.xpose.msra.mxu0 0.0
        %1243 = vmatprep.subr.mxu0 0.0
        %1244 = vmatpush1.xpose.msra.mxu0 0.0
        %1245 = vmatprep.subr.mxu0 0.0
        %1246 = vmatpush1.xpose.msra.mxu0 0.0
        %1247 = vmatprep.subr.mxu0 0.0
        %1248 = vmatpush1.xpose.msra.mxu0 0.0
        %1249 = vmatprep.mubr.f32.mxu0 0.0
        %1250 = vmatmul.mubr.f32.gmra.mrb[0].mxu0 %v1177
        %v1251 = vpop.f32.mrb[0].mxu0
        %v1252 = vadd.f32 %v871, %v1251
        %v1253 = vpop.f32.mrb[0].mxu0
        %1254 = vmatprep.mubr.f32.mxu0 0.0
        %1255 = vmatmul.mubr.f32.gmra.mrb[0].mxu0 %v1179
        %v1256 = vpop.f32.mrb[0].mxu0
        %v1257 = vadd.f32 %v872, %v1256
        %v1258 = vpop.f32.mrb[0].mxu0
        %1259 = vdwg.mxu0
        %v1260 = vsel %vm976, %v1252, -inf
        %1261 = vmax.xlane.f32.xlu0 %v1260
        %v1262 = vpop.xlane.xlu0 %1261
        %v1263 = vsel %vm976, %v1257, -inf
        %1264 = vmax.xlane.f32.xlu0 %v1263
        %v1265 = vpop.xlane.xlu0 %1264
        %v1266 = vsub.f32 %v1252, %v1262
        %v1267 = vsub.f32 %v1257, %v1265
        %v1268 = vmul.f32 %v1266, 1.442695
        %v1269 = vpow.pop %v1268
        %v1270 = vmul.f32 %v1267, 1.442695
        %v1271 = vpow.pop %v1270
        %v1272 = vsel %vm976, %v1269, 0.0
        %1273 = vadd.xlane.f32.xlu0 %v1272
        %v1274 = vpop.xlane.xlu0 %1273
        %v1275 = vsel %vm976, %v1271, 0.0
        %1276 = vadd.xlane.f32.xlu0 %v1275
        %v1277 = vpop.xlane.xlu0 %1276
        %v1278 = vrcp.pop %v1274
        %v1279 = vrcp.pop %v1277
        %v1280 = vmul.f32 %v1269, %v1278
        %v1281 = vmul.f32 %v1271, %v1279
        %1282 = vrot.lane.b32.xlu0 %v958, 48
        %v1283 = vpop.permute.xlu0 %1282
        %1284 = vrot.lane.b32.xlu0 %v963, 48
        %v1285 = vpop.permute.xlu0 %1284
        %v1289 = vsel %vm976, %v1280, 0
        %v1292 = vsel %vm976, %v1281, 0
        %1294 = vmatprep.subr.mxu0 0.0
        %1295 = vmatpush1.msra.mxu0 %v1283
        %1296 = vmatprep.subr.mxu0 0.0
        %1297 = vmatpush1.msra.mxu0 %v1285
        %1298 = vmatprep.subr.mxu0 0.0
        %1299 = vmatpush1.msra.mxu0 0.0
        %1300 = vmatprep.subr.mxu0 0.0
        %1301 = vmatpush1.msra.mxu0 0.0
        %1302 = vmatprep.subr.mxu0 0.0
        %1303 = vmatpush1.msra.mxu0 0.0
        %1304 = vmatprep.subr.mxu0 0.0
        %1305 = vmatpush1.msra.mxu0 0.0
        %1306 = vmatprep.subr.mxu0 0.0
        %1307 = vmatpush1.msra.mxu0 0.0
        %1308 = vmatprep.subr.mxu0 0.0
        %1309 = vmatpush1.msra.mxu0 0.0
        %1310 = vmatprep.subr.mxu0 0.0
        %1311 = vmatpush1.msra.mxu0 0.0
        %1312 = vmatprep.subr.mxu0 0.0
        %1313 = vmatpush1.msra.mxu0 0.0
        %1314 = vmatprep.subr.mxu0 0.0
        %1315 = vmatpush1.msra.mxu0 0.0
        %1316 = vmatprep.subr.mxu0 0.0
        %1317 = vmatpush1.msra.mxu0 0.0
        %1318 = vmatprep.subr.mxu0 0.0
        %1319 = vmatpush1.msra.mxu0 0.0
        %1320 = vmatprep.subr.mxu0 0.0
        %1321 = vmatpush1.msra.mxu0 0.0
        %1322 = vmatprep.subr.mxu0 0.0
        %1323 = vmatpush1.msra.mxu0 0.0
        %1324 = vmatprep.subr.mxu0 0.0
        %1325 = vmatpush1.msra.mxu0 0.0
        %1326 = vmatprep.subr.mxu0 0.0
        %1327 = vmatpush1.msra.mxu0 0.0
        %1328 = vmatprep.subr.mxu0 0.0
        %1329 = vmatpush1.msra.mxu0 0.0
        %1330 = vmatprep.subr.mxu0 0.0
        %1331 = vmatpush1.msra.mxu0 0.0
        %1332 = vmatprep.subr.mxu0 0.0
        %1333 = vmatpush1.msra.mxu0 0.0
        %1334 = vmatprep.subr.mxu0 0.0
        %1335 = vmatpush1.msra.mxu0 0.0
        %1336 = vmatprep.subr.mxu0 0.0
        %1337 = vmatpush1.msra.mxu0 0.0
        %1338 = vmatprep.subr.mxu0 0.0
        %1339 = vmatpush1.msra.mxu0 0.0
        %1340 = vmatprep.subr.mxu0 0.0
        %1341 = vmatpush1.msra.mxu0 0.0
        %1342 = vmatprep.subr.mxu0 0.0
        %1343 = vmatpush1.msra.mxu0 0.0
        %1344 = vmatprep.subr.mxu0 0.0
        %1345 = vmatpush1.msra.mxu0 0.0
        %1346 = vmatprep.subr.mxu0 0.0
        %1347 = vmatpush1.msra.mxu0 0.0
        %1348 = vmatprep.subr.mxu0 0.0
        %1349 = vmatpush1.msra.mxu0 0.0
        %1350 = vmatprep.subr.mxu0 0.0
        %1351 = vmatpush1.msra.mxu0 0.0
        %1352 = vmatprep.subr.mxu0 0.0
        %1353 = vmatpush1.msra.mxu0 0.0
        %1354 = vmatprep.subr.mxu0 0.0
        %1355 = vmatpush1.msra.mxu0 0.0
        %1356 = vmatprep.subr.mxu0 0.0
        %1357 = vmatpush1.msra.mxu0 0.0
        %1358 = vmatprep.mubr.f32.mxu0 0.0
        %1359 = vmatmul.mubr.f32.gmra.mrb[0].mxu0 %v1289
        %v1360 = vpop.f32.mrb[0].mxu0
        %v1361 = vadd.f32 0.0, %v1360
        %v1362 = vpop.f32.mrb[0].mxu0
        %1363 = vmatprep.mubr.f32.mxu0 0.0
        %1364 = vmatmul.mubr.f32.gmra.mrb[0].mxu0 %v1292
        %v1365 = vpop.f32.mrb[0].mxu0
        %v1366 = vadd.f32 0.0, %v1365
        %v1367 = vpop.f32.mrb[0].mxu0
        %1368 = vdwg.mxu0
        %v1370 = vsel %vm976, %v1361, 0
        %v1373 = vsel %vm976, %v1366, 0
        %1375 = vmatprep.subr.mxu0 0.0
        %1376 = vmatpush1.msra.mxu0 %v968
        %1377 = vmatprep.subr.mxu0 0.0
        %1378 = vmatpush1.msra.mxu0 %v969
        %1379 = vmatprep.subr.mxu0 0.0
        %1380 = vmatpush1.msra.mxu0 0.0
        %1381 = vmatprep.subr.mxu0 0.0
        %1382 = vmatpush1.msra.mxu0 0.0
        %1383 = vmatprep.subr.mxu0 0.0
        %1384 = vmatpush1.msra.mxu0 0.0
        %1385 = vmatprep.subr.mxu0 0.0
        %1386 = vmatpush1.msra.mxu0 0.0
        %1387 = vmatprep.subr.mxu0 0.0
        %1388 = vmatpush1.msra.mxu0 0.0
        %1389 = vmatprep.subr.mxu0 0.0
        %1390 = vmatpush1.msra.mxu0 0.0
        %1391 = vmatprep.subr.mxu0 0.0
        %1392 = vmatpush1.msra.mxu0 0.0
        %1393 = vmatprep.subr.mxu0 0.0
        %1394 = vmatpush1.msra.mxu0 0.0
        %1395 = vmatprep.subr.mxu0 0.0
        %1396 = vmatpush1.msra.mxu0 0.0
        %1397 = vmatprep.subr.mxu0 0.0
        %1398 = vmatpush1.msra.mxu0 0.0
        %1399 = vmatprep.subr.mxu0 0.0
        %1400 = vmatpush1.msra.mxu0 0.0
        %1401 = vmatprep.subr.mxu0 0.0
        %1402 = vmatpush1.msra.mxu0 0.0
        %1403 = vmatprep.subr.mxu0 0.0
        %1404 = vmatpush1.msra.mxu0 0.0
        %1405 = vmatprep.subr.mxu0 0.0
        %1406 = vmatpush1.msra.mxu0 0.0
        %1407 = vmatprep.subr.mxu0 0.0
        %1408 = vmatpush1.msra.mxu0 0.0
        %1409 = vmatprep.subr.mxu0 0.0
        %1410 = vmatpush1.msra.mxu0 0.0
        %1411 = vmatprep.subr.mxu0 0.0
        %1412 = vmatpush1.msra.mxu0 0.0
        %1413 = vmatprep.subr.mxu0 0.0
        %1414 = vmatpush1.msra.mxu0 0.0
        %1415 = vmatprep.subr.mxu0 0.0
        %1416 = vmatpush1.msra.mxu0 0.0
        %1417 = vmatprep.subr.mxu0 0.0
        %1418 = vmatpush1.msra.mxu0 0.0
        %1419 = vmatprep.subr.mxu0 0.0
        %1420 = vmatpush1.msra.mxu0 0.0
        %1421 = vmatprep.subr.mxu0 0.0
        %1422 = vmatpush1.msra.mxu0 0.0
        %1423 = vmatprep.subr.mxu0 0.0
        %1424 = vmatpush1.msra.mxu0 0.0
        %1425 = vmatprep.subr.mxu0 0.0
        %1426 = vmatpush1.msra.mxu0 0.0
        %1427 = vmatprep.subr.mxu0 0.0
        %1428 = vmatpush1.msra.mxu0 0.0
        %1429 = vmatprep.subr.mxu0 0.0
        %1430 = vmatpush1.msra.mxu0 0.0
        %1431 = vmatprep.subr.mxu0 0.0
        %1432 = vmatpush1.msra.mxu0 0.0
        %1433 = vmatprep.subr.mxu0 0.0
        %1434 = vmatpush1.msra.mxu0 0.0
        %1435 = vmatprep.subr.mxu0 0.0
        %1436 = vmatpush1.msra.mxu0 0.0
        %1437 = vmatprep.subr.mxu0 0.0
        %1438 = vmatpush1.msra.mxu0 0.0
        %1439 = vmatprep.mubr.f32.mxu0 0.0
        %1440 = vmatmul.mubr.f32.gmra.mrb[0].mxu0 %v1370
        %v1441 = vpop.f32.mrb[0].mxu0
        %v1442 = vadd.f32 0.0, %v1441
        %v1443 = vpop.f32.mrb[0].mxu0
        %1444 = vmatprep.mubr.f32.mxu0 0.0
        %1445 = vmatmul.mubr.f32.gmra.mrb[0].mxu0 %v1373
        %v1446 = vpop.f32.mrb[0].mxu0
        %v1447 = vadd.f32 0.0, %v1446
        %v1448 = vpop.f32.mrb[0].mxu0
        %1449 = vdwg.mxu0
        %v1451 = vsel %vm976, %v1161, 0
        %v1454 = vsel %vm976, %v1166, 0
        %1456 = vmatprep.subr.mxu0 0.0
        %1457 = vmatpush1.msra.mxu0 %v966
        %1458 = vmatprep.subr.mxu0 0.0
        %1459 = vmatpush1.msra.mxu0 %v967
        %1460 = vmatprep.subr.mxu0 0.0
        %1461 = vmatpush1.msra.mxu0 0.0
        %1462 = vmatprep.subr.mxu0 0.0
        %1463 = vmatpush1.msra.mxu0 0.0
        %1464 = vmatprep.subr.mxu0 0.0
        %1465 = vmatpush1.msra.mxu0 0.0
        %1466 = vmatprep.subr.mxu0 0.0
        %1467 = vmatpush1.msra.mxu0 0.0
        %1468 = vmatprep.subr.mxu0 0.0
        %1469 = vmatpush1.msra.mxu0 0.0
        %1470 = vmatprep.subr.mxu0 0.0
        %1471 = vmatpush1.msra.mxu0 0.0
        %1472 = vmatprep.subr.mxu0 0.0
        %1473 = vmatpush1.msra.mxu0 0.0
        %1474 = vmatprep.subr.mxu0 0.0
        %1475 = vmatpush1.msra.mxu0 0.0
        %1476 = vmatprep.subr.mxu0 0.0
        %1477 = vmatpush1.msra.mxu0 0.0
        %1478 = vmatprep.subr.mxu0 0.0
        %1479 = vmatpush1.msra.mxu0 0.0
        %1480 = vmatprep.subr.mxu0 0.0
        %1481 = vmatpush1.msra.mxu0 0.0
        %1482 = vmatprep.subr.mxu0 0.0
        %1483 = vmatpush1.msra.mxu0 0.0
        %1484 = vmatprep.subr.mxu0 0.0
        %1485 = vmatpush1.msra.mxu0 0.0
        %1486 = vmatprep.subr.mxu0 0.0
        %1487 = vmatpush1.msra.mxu0 0.0
        %1488 = vmatprep.subr.mxu0 0.0
        %1489 = vmatpush1.msra.mxu0 0.0
        %1490 = vmatprep.subr.mxu0 0.0
        %1491 = vmatpush1.msra.mxu0 0.0
        %1492 = vmatprep.subr.mxu0 0.0
        %1493 = vmatpush1.msra.mxu0 0.0
        %1494 = vmatprep.subr.mxu0 0.0
        %1495 = vmatpush1.msra.mxu0 0.0
        %1496 = vmatprep.subr.mxu0 0.0
        %1497 = vmatpush1.msra.mxu0 0.0
        %1498 = vmatprep.subr.mxu0 0.0
        %1499 = vmatpush1.msra.mxu0 0.0
        %1500 = vmatprep.subr.mxu0 0.0
        %1501 = vmatpush1.msra.mxu0 0.0
        %1502 = vmatprep.subr.mxu0 0.0
        %1503 = vmatpush1.msra.mxu0 0.0
        %1504 = vmatprep.subr.mxu0 0.0
        %1505 = vmatpush1.msra.mxu0 0.0
        %1506 = vmatprep.subr.mxu0 0.0
        %1507 = vmatpush1.msra.mxu0 0.0
        %1508 = vmatprep.subr.mxu0 0.0
        %1509 = vmatpush1.msra.mxu0 0.0
        %1510 = vmatprep.subr.mxu0 0.0
        %1511 = vmatpush1.msra.mxu0 0.0
        %1512 = vmatprep.subr.mxu0 0.0
        %1513 = vmatpush1.msra.mxu0 0.0
        %1514 = vmatprep.subr.mxu0 0.0
        %1515 = vmatpush1.msra.mxu0 0.0
        %1516 = vmatprep.subr.mxu0 0.0
        %1517 = vmatpush1.msra.mxu0 0.0
        %1518 = vmatprep.subr.mxu0 0.0
        %1519 = vmatpush1.msra.mxu0 0.0
        %1520 = vmatprep.mubr.f32.mxu0 0.0
        %1521 = vmatmul.mubr.f32.gmra.mrb[0].mxu0 %v1451
        %v1522 = vpop.f32.mrb[0].mxu0
        %v1523 = vadd.f32 %v1442, %v1522
        %v1524 = vpop.f32.mrb[0].mxu0
        %1525 = vmatprep.mubr.f32.mxu0 0.0
        %1526 = vmatmul.mubr.f32.gmra.mrb[0].mxu0 %v1454
        %v1527 = vpop.f32.mrb[0].mxu0
        %v1528 = vadd.f32 %v1447, %v1527
        %v1529 = vpop.f32.mrb[0].mxu0
        %1530 = vdwg.mxu0
        %v1531 = vld [vmem:[%s786] sm:$0x1]
        %v1533 = vlaneseq
        %v1534 = vshrl.u32 %v1533, 7
        %v1535 = vsub.s32 0, %v1534
        %v1536 = vrot.slane %v1531, %v1535
        %v1538 = vadd.f32 %v1523, %v1536
        %v1539 = vadd.f32 %v1528, %v1536
        %v1540 = vadd.f32 %v1538, %v869
        %v1541 = vadd.f32 %v1539, %v870
        %v1542 = vld [vmem:[%s789] sm:$0x1]
        %v1543 = vld [vmem:[%s792] sm:$0x1]
        %v1544 = vsel %vm884, %v1540, 0.0
        %1545 = vadd.xlane.f32.xlu0 %v1544
        %v1546 = vpop.xlane.xlu0 %1545
        %v1547 = vsel %vm884, %v1541, 0.0
        %1548 = vadd.xlane.f32.xlu0 %v1547
        %v1549 = vpop.xlane.xlu0 %1548
        %v1550 = vrcp.pop 32.0
        %v1551 = vmul.f32 %v1546, %v1550
        %v1552 = vmul.f32 %v1549, %v1550
        %v1553 = vsub.f32 %v1540, %v1551
        %v1554 = vsub.f32 %v1541, %v1552
        %v1555 = vmul.f32 %v1553, %v1553
        %v1556 = vmul.f32 %v1554, %v1554
        %v1557 = vsel %vm884, %v1555, 0.0
        %1558 = vadd.xlane.f32.xlu0 %v1557
        %v1559 = vpop.xlane.xlu0 %1558
        %v1560 = vsel %vm884, %v1556, 0.0
        %1561 = vadd.xlane.f32.xlu0 %v1560
        %v1562 = vpop.xlane.xlu0 %1561
        %v1563 = vmul.f32 %v1559, %v1550
        %v1564 = vmul.f32 %v1562, %v1550
        %v1565 = vadd.f32 %v1563, 1e-12
        %v1566 = vadd.f32 %v1564, 1e-12
        %v1567 = vrsqrt.pop %v1565
        %v1568 = vrsqrt.pop %v1566
        %v1569 = vmul.f32 %v1553, %v1567
        %v1570 = vmul.f32 %v1554, %v1568
        %v1572 = vlaneseq
        %v1573 = vshrl.u32 %v1572, 7
        %v1574 = vsub.s32 0, %v1573
        %v1575 = vrot.slane %v1542, %v1574
        %v1577 = vmul.f32 %v1569, %v1575
        %v1578 = vmul.f32 %v1570, %v1575
        %v1580 = vlaneseq
        %v1581 = vshrl.u32 %v1580, 7
        %v1582 = vsub.s32 0, %v1581
        %v1583 = vrot.slane %v1543, %v1582
        %v1585 = vadd.f32 %v1577, %v1583
        %v1586 = vadd.f32 %v1578, %v1583
        %v1587 = vld [vmem:[%s797] sm:$0xff]
        %v1588 = vld [vmem:[%s797 + $0x8] sm:$0xff]
        %v1589 = vld [vmem:[%s797 + $0x10] sm:$0xff]
        %v1590 = vld [vmem:[%s797 + $0x18] sm:$0xff]
        %v1591 = vld [vmem:[%s800] sm:$0x1]
        %v1593 = vlaneseq
        %v1594 = vshrl.u32 %v1593, 7
        %v1595 = vsub.s32 0, %v1594
        %v1596 = vrot.slane %v1591, %v1595
        %v1599 = vsel %vm884, %v1585, 0
        %v1602 = vsel %vm884, %v1586, 0
        %1604 = vmatprep.subr.mxu0 0.0
        %1605 = vmatpush1.msra.mxu0 %v1587
        %1606 = vmatprep.subr.mxu0 0.0
        %1607 = vmatpush1.msra.mxu0 %v1588
        %1608 = vmatprep.subr.mxu0 0.0
        %1609 = vmatpush1.msra.mxu0 %v1589
        %1610 = vmatprep.subr.mxu0 0.0
        %1611 = vmatpush1.msra.mxu0 %v1590
        %1612 = vmatprep.subr.mxu0 0.0
        %1613 = vmatpush1.msra.mxu0 0.0
        %1614 = vmatprep.subr.mxu0 0.0
        %1615 = vmatpush1.msra.mxu0 0.0
        %1616 = vmatprep.subr.mxu0 0.0
        %1617 = vmatpush1.msra.mxu0 0.0
        %1618 = vmatprep.subr.mxu0 0.0
        %1619 = vmatpush1.msra.mxu0 0.0
        %1620 = vmatprep.subr.mxu0 0.0
        %1621 = vmatpush1.msra.mxu0 0.0
        %1622 = vmatprep.subr.mxu0 0.0
        %1623 = vmatpush1.msra.mxu0 0.0
        %1624 = vmatprep.subr.mxu0 0.0
        %1625 = vmatpush1.msra.mxu0 0.0
        %1626 = vmatprep.subr.mxu0 0.0
        %1627 = vmatpush1.msra.mxu0 0.0
        %1628 = vmatprep.subr.mxu0 0.0
        %1629 = vmatpush1.msra.mxu0 0.0
        %1630 = vmatprep.subr.mxu0 0.0
        %1631 = vmatpush1.msra.mxu0 0.0
        %1632 = vmatprep.subr.mxu0 0.0
        %1633 = vmatpush1.msra.mxu0 0.0
        %1634 = vmatprep.subr.mxu0 0.0
        %1635 = vmatpush1.msra.mxu0 0.0
        %1636 = vmatprep.subr.mxu0 0.0
        %1637 = vmatpush1.msra.mxu0 0.0
        %1638 = vmatprep.subr.mxu0 0.0
        %1639 = vmatpush1.msra.mxu0 0.0
        %1640 = vmatprep.subr.mxu0 0.0
        %1641 = vmatpush1.msra.mxu0 0.0
        %1642 = vmatprep.subr.mxu0 0.0
        %1643 = vmatpush1.msra.mxu0 0.0
        %1644 = vmatprep.subr.mxu0 0.0
        %1645 = vmatpush1.msra.mxu0 0.0
        %1646 = vmatprep.subr.mxu0 0.0
        %1647 = vmatpush1.msra.mxu0 0.0
        %1648 = vmatprep.subr.mxu0 0.0
        %1649 = vmatpush1.msra.mxu0 0.0
        %1650 = vmatprep.subr.mxu0 0.0
        %1651 = vmatpush1.msra.mxu0 0.0
        %1652 = vmatprep.subr.mxu0 0.0
        %1653 = vmatpush1.msra.mxu0 0.0
        %1654 = vmatprep.subr.mxu0 0.0
        %1655 = vmatpush1.msra.mxu0 0.0
        %1656 = vmatprep.subr.mxu0 0.0
        %1657 = vmatpush1.msra.mxu0 0.0
        %1658 = vmatprep.subr.mxu0 0.0
        %1659 = vmatpush1.msra.mxu0 0.0
        %1660 = vmatprep.subr.mxu0 0.0
        %1661 = vmatpush1.msra.mxu0 0.0
        %1662 = vmatprep.subr.mxu0 0.0
        %1663 = vmatpush1.msra.mxu0 0.0
        %1664 = vmatprep.subr.mxu0 0.0
        %1665 = vmatpush1.msra.mxu0 0.0
        %1666 = vmatprep.subr.mxu0 0.0
        %1667 = vmatpush1.msra.mxu0 0.0
        %1668 = vmatprep.mubr.f32.mxu0 0.0
        %1669 = vmatmul.mubr.f32.gmra.mrb[0].mxu0 %v1599
        %v1670 = vpop.f32.mrb[0].mxu0
        %v1671 = vadd.f32 %v1596, %v1670
        %v1672 = vpop.f32.mrb[0].mxu0
        %1673 = vmatprep.mubr.f32.mxu0 0.0
        %1674 = vmatmul.mubr.f32.gmra.mrb[0].mxu0 %v1602
        %v1675 = vpop.f32.mrb[0].mxu0
        %v1676 = vadd.f32 %v1596, %v1675
        %v1677 = vpop.f32.mrb[0].mxu0
        %1678 = vdwg.mxu0
        %v1679 = vmul.f32 %v1671, %v1671
        %v1680 = vmul.f32 %v1676, %v1676
        %v1681 = vmul.f32 %v1671, %v1679
        %v1682 = vmul.f32 %v1676, %v1680
        %v1683 = vmul.f32 %v1681, 0.044715
        %v1684 = vmul.f32 %v1682, 0.044715
        %v1685 = vadd.f32 %v1671, %v1683
        %v1686 = vadd.f32 %v1676, %v1684
        %v1687 = vmul.f32 %v1685, 0.7978846
        %v1688 = vmul.f32 %v1686, 0.7978846
        %v1689 = vtanh.pop %v1687
        %v1690 = vtanh.pop %v1688
        %v1691 = vadd.f32 %v1689, 1.0
        %v1692 = vadd.f32 %v1690, 1.0
        %v1693 = vmul.f32 %v1691, 0.5
        %v1694 = vmul.f32 %v1692, 0.5
        %v1695 = vmul.f32 %v1671, %v1693
        %v1696 = vmul.f32 %v1676, %v1694
        %v1697 = vld [vmem:[%s805] sm:$0xff]
        %v1698 = vld [vmem:[%s805 + $0x8] sm:$0xff]
        %v1699 = vld [vmem:[%s805 + $0x10] sm:$0xff]
        %v1700 = vld [vmem:[%s805 + $0x18] sm:$0xff]
        %v1701 = vld [vmem:[%s805 + $0x20] sm:$0xff]
        %v1702 = vld [vmem:[%s805 + $0x28] sm:$0xff]
        %v1703 = vld [vmem:[%s805 + $0x30] sm:$0xff]
        %v1704 = vld [vmem:[%s805 + $0x38] sm:$0xff]
        %v1705 = vld [vmem:[%s808] sm:$0x1]
        %v1707 = vlaneseq
        %v1708 = vshrl.u32 %v1707, 7
        %v1709 = vsub.s32 0, %v1708
        %v1710 = vrot.slane %v1705, %v1709
        %vm1712 = vcmask 523264
        %v1714 = vsel %vm1712, %v1695, 0
        %v1717 = vsel %vm1712, %v1696, 0
        %1719 = vmatprep.subr.mxu0 0.0
        %1720 = vmatpush1.msra.mxu0 %v1697
        %1721 = vmatprep.subr.mxu0 0.0
        %1722 = vmatpush1.msra.mxu0 %v1698
        %1723 = vmatprep.subr.mxu0 0.0
        %1724 = vmatpush1.msra.mxu0 %v1699
        %1725 = vmatprep.subr.mxu0 0.0
        %1726 = vmatpush1.msra.mxu0 %v1700
        %1727 = vmatprep.subr.mxu0 0.0
        %1728 = vmatpush1.msra.mxu0 %v1701
        %1729 = vmatprep.subr.mxu0 0.0
        %1730 = vmatpush1.msra.mxu0 %v1702
        %1731 = vmatprep.subr.mxu0 0.0
        %1732 = vmatpush1.msra.mxu0 %v1703
        %1733 = vmatprep.subr.mxu0 0.0
        %1734 = vmatpush1.msra.mxu0 %v1704
        %1735 = vmatprep.subr.mxu0 0.0
        %1736 = vmatpush1.msra.mxu0 0.0
        %1737 = vmatprep.subr.mxu0 0.0
        %1738 = vmatpush1.msra.mxu0 0.0
        %1739 = vmatprep.subr.mxu0 0.0
        %1740 = vmatpush1.msra.mxu0 0.0
        %1741 = vmatprep.subr.mxu0 0.0
        %1742 = vmatpush1.msra.mxu0 0.0
        %1743 = vmatprep.subr.mxu0 0.0
        %1744 = vmatpush1.msra.mxu0 0.0
        %1745 = vmatprep.subr.mxu0 0.0
        %1746 = vmatpush1.msra.mxu0 0.0
        %1747 = vmatprep.subr.mxu0 0.0
        %1748 = vmatpush1.msra.mxu0 0.0
        %1749 = vmatprep.subr.mxu0 0.0
        %1750 = vmatpush1.msra.mxu0 0.0
        %1751 = vmatprep.subr.mxu0 0.0
        %1752 = vmatpush1.msra.mxu0 0.0
        %1753 = vmatprep.subr.mxu0 0.0
        %1754 = vmatpush1.msra.mxu0 0.0
        %1755 = vmatprep.subr.mxu0 0.0
        %1756 = vmatpush1.msra.mxu0 0.0
        %1757 = vmatprep.subr.mxu0 0.0
        %1758 = vmatpush1.msra.mxu0 0.0
        %1759 = vmatprep.subr.mxu0 0.0
        %1760 = vmatpush1.msra.mxu0 0.0
        %1761 = vmatprep.subr.mxu0 0.0
        %1762 = vmatpush1.msra.mxu0 0.0
        %1763 = vmatprep.subr.mxu0 0.0
        %1764 = vmatpush1.msra.mxu0 0.0
        %1765 = vmatprep.subr.mxu0 0.0
        %1766 = vmatpush1.msra.mxu0 0.0
        %1767 = vmatprep.subr.mxu0 0.0
        %1768 = vmatpush1.msra.mxu0 0.0
        %1769 = vmatprep.subr.mxu0 0.0
        %1770 = vmatpush1.msra.mxu0 0.0
        %1771 = vmatprep.subr.mxu0 0.0
        %1772 = vmatpush1.msra.mxu0 0.0
        %1773 = vmatprep.subr.mxu0 0.0
        %1774 = vmatpush1.msra.mxu0 0.0
        %1775 = vmatprep.subr.mxu0 0.0
        %1776 = vmatpush1.msra.mxu0 0.0
        %1777 = vmatprep.subr.mxu0 0.0
        %1778 = vmatpush1.msra.mxu0 0.0
        %1779 = vmatprep.subr.mxu0 0.0
        %1780 = vmatpush1.msra.mxu0 0.0
        %1781 = vmatprep.subr.mxu0 0.0
        %1782 = vmatpush1.msra.mxu0 0.0
        %1783 = vmatprep.mubr.f32.mxu0 0.0
        %1784 = vmatmul.mubr.f32.gmra.mrb[0].mxu0 %v1714
        %v1785 = vpop.f32.mrb[0].mxu0
        %v1786 = vadd.f32 %v1710, %v1785
        %v1787 = vpop.f32.mrb[0].mxu0
        %1788 = vmatprep.mubr.f32.mxu0 0.0
        %1789 = vmatmul.mubr.f32.gmra.mrb[0].mxu0 %v1717
        %v1790 = vpop.f32.mrb[0].mxu0
        %v1791 = vadd.f32 %v1710, %v1790
        %v1792 = vpop.f32.mrb[0].mxu0
        %1793 = vdwg.mxu0
        %v1794 = vadd.f32 %v1786, %v1585
        %v1795 = vadd.f32 %v1791, %v1586
        %v1796 = vld [vmem:[%s811] sm:$0x1]
        %v1797 = vld [vmem:[%s814] sm:$0x1]
        %v1798 = vsel %vm884, %v1794, 0.0
        %1799 = vadd.xlane.f32.xlu0 %v1798
        %v1800 = vpop.xlane.xlu0 %1799
        %v1801 = vsel %vm884, %v1795, 0.0
        %1802 = vadd.xlane.f32.xlu0 %v1801
        %v1803 = vpop.xlane.xlu0 %1802
        %v1804 = vmul.f32 %v1800, %v1550
        %v1805 = vmul.f32 %v1803, %v1550
        %v1806 = vsub.f32 %v1794, %v1804
        %v1807 = vsub.f32 %v1795, %v1805
        %v1808 = vmul.f32 %v1806, %v1806
        %v1809 = vmul.f32 %v1807, %v1807
        %v1810 = vsel %vm884, %v1808, 0.0
        %1811 = vadd.xlane.f32.xlu0 %v1810
        %v1812 = vpop.xlane.xlu0 %1811
        %v1813 = vsel %vm884, %v1809, 0.0
        %1814 = vadd.xlane.f32.xlu0 %v1813
        %v1815 = vpop.xlane.xlu0 %1814
        %v1816 = vmul.f32 %v1812, %v1550
        %v1817 = vmul.f32 %v1815, %v1550
        %v1818 = vadd.f32 %v1816, 1e-12
        %v1819 = vadd.f32 %v1817, 1e-12
        %v1820 = vrsqrt.pop %v1818
        %v1821 = vrsqrt.pop %v1819
        %v1822 = vmul.f32 %v1806, %v1820
        %v1823 = vmul.f32 %v1807, %v1821
        %v1825 = vlaneseq
        %v1826 = vshrl.u32 %v1825, 7
        %v1827 = vsub.s32 0, %v1826
        %v1828 = vrot.slane %v1796, %v1827
        %v1830 = vmul.f32 %v1822, %v1828
        %v1831 = vmul.f32 %v1823, %v1828
        %v1833 = vlaneseq
        %v1834 = vshrl.u32 %v1833, 7
        %v1835 = vsub.s32 0, %v1834
        %v1836 = vrot.slane %v1797, %v1835
        %v1838 = vadd.f32 %v1830, %v1836
        %v1839 = vadd.f32 %v1831, %v1836
        %1840 = vst.msk [vmem:[#allocation2] sm:$0xff] %vm884, %v1838
        %1841 = vst.msk [vmem:[#allocation2 + $0x8] sm:$0xff] %vm884, %v1839
        %p1842 = scmp.eq.s32.totalorder %s33, 1
        // Predicated region
        $region109: #{sentiment_analyzer_forward.1} parent=103 // pred_check
          %p1843 = pneg %p1842
        $region110: #{sentiment_analyzer_forward.1} parent=103 // pred_check_branch
          %1845 = sbr.rel (%p1843) target = $region112
        $region111: #{sentiment_analyzer_forward.1} parent=103 // pred_region
          %v1846 = vld [vmem:[%s2] sm:$0x3]
          %v1848 = vsel %vm976, %v1846, 0
          %1850 = vmatprep.subr.mxu0 0.0
          %1851 = vmatpush1.msra.mxu0 %v1838
          %1852 = vmatprep.subr.mxu0 0.0
          %1853 = vmatpush1.msra.mxu0 %v1839
          %1854 = vmatprep.subr.mxu0 0.0
          %1855 = vmatpush1.msra.mxu0 0.0
          %1856 = vmatprep.subr.mxu0 0.0
          %1857 = vmatpush1.msra.mxu0 0.0
          %1858 = vmatprep.subr.mxu0 0.0
          %1859 = vmatpush1.msra.mxu0 0.0
          %1860 = vmatprep.subr.mxu0 0.0
          %1861 = vmatpush1.msra.mxu0 0.0
          %1862 = vmatprep.subr.mxu0 0.0
          %1863 = vmatpush1.msra.mxu0 0.0
          %1864 = vmatprep.subr.mxu0 0.0
          %1865 = vmatpush1.msra.mxu0 0.0
          %1866 = vmatprep.subr.mxu0 0.0
          %1867 = vmatpush1.msra.mxu0 0.0
          %1868 = vmatprep.subr.mxu0 0.0
          %1869 = vmatpush1.msra.mxu0 0.0
          %1870 = vmatprep.subr.mxu0 0.0
          %1871 = vmatpush1.msra.mxu0 0.0
          %1872 = vmatprep.subr.mxu0 0.0
          %1873 = vmatpush1.msra.mxu0 0.0
          %1874 = vmatprep.subr.mxu0 0.0
          %1875 = vmatpush1.msra.mxu0 0.0
          %1876 = vmatprep.subr.mxu0 0.0
          %1877 = vmatpush1.msra.mxu0 0.0
          %1878 = vmatprep.subr.mxu0 0.0
          %1879 = vmatpush1.msra.mxu0 0.0
          %1880 = vmatprep.subr.mxu0 0.0
          %1881 = vmatpush1.msra.mxu0 0.0
          %1882 = vmatprep.subr.mxu0 0.0
          %1883 = vmatpush1.msra.mxu0 0.0
          %1884 = vmatprep.subr.mxu0 0.0
          %1885 = vmatpush1.msra.mxu0 0.0
          %1886 = vmatprep.subr.mxu0 0.0
          %1887 = vmatpush1.msra.mxu0 0.0
          %1888 = vmatprep.subr.mxu0 0.0
          %1889 = vmatpush1.msra.mxu0 0.0
          %1890 = vmatprep.subr.mxu0 0.0
          %1891 = vmatpush1.msra.mxu0 0.0
          %1892 = vmatprep.subr.mxu0 0.0
          %1893 = vmatpush1.msra.mxu0 0.0
          %1894 = vmatprep.subr.mxu0 0.0
          %1895 = vmatpush1.msra.mxu0 0.0
          %1896 = vmatprep.subr.mxu0 0.0
          %1897 = vmatpush1.msra.mxu0 0.0
          %1898 = vmatprep.subr.mxu0 0.0
          %1899 = vmatpush1.msra.mxu0 0.0
          %1900 = vmatprep.subr.mxu0 0.0
          %1901 = vmatpush1.msra.mxu0 0.0
          %1902 = vmatprep.subr.mxu0 0.0
          %1903 = vmatpush1.msra.mxu0 0.0
          %1904 = vmatprep.subr.mxu0 0.0
          %1905 = vmatpush1.msra.mxu0 0.0
          %1906 = vmatprep.subr.mxu0 0.0
          %1907 = vmatpush1.msra.mxu0 0.0
          %1908 = vmatprep.subr.mxu0 0.0
          %1909 = vmatpush1.msra.mxu0 0.0
          %1910 = vmatprep.subr.mxu0 0.0
          %1911 = vmatpush1.msra.mxu0 0.0
          %1912 = vmatprep.subr.mxu0 0.0
          %1913 = vmatpush1.msra.mxu0 0.0
          %1914 = vmatprep.mubr.f32.mxu0 0.0
          %1915 = vmatmul.mubr.f32.gmra.mrb[0].mxu0 %v1848
          %v1916 = vpop.f32.mrb[0].mxu0
          %v1917 = vadd.f32 0.0, %v1916
          %v1918 = vpop.f32.mrb[0].mxu0
          %1919 = vdwg.mxu0
          %v1920 = vld [vmem:[%s17] sm:$0xff]
          %v1921 = vld [vmem:[%s17 + $0x8] sm:$0xff]
          %v1922 = vld [vmem:[%s17 + $0x10] sm:$0xff]
          %v1923 = vld [vmem:[%s17 + $0x18] sm:$0xff]
          %v1924 = vld [vmem:[%s18] sm:$0x1]
          %v1926 = vlaneseq
          %v1927 = vshrl.u32 %v1926, 7
          %v1928 = vsub.s32 0, %v1927
          %v1929 = vrot.slane %v1924, %v1928
          %v1932 = vsel %vm884, %v1917, 0
          %1934 = vmatprep.subr.mxu0 0.0
          %1935 = vmatpush1.msra.mxu0 %v1920
          %1936 = vmatprep.subr.mxu0 0.0
          %1937 = vmatpush1.msra.mxu0 %v1921
          %1938 = vmatprep.subr.mxu0 0.0
          %1939 = vmatpush1.msra.mxu0 %v1922
          %1940 = vmatprep.subr.mxu0 0.0
          %1941 = vmatpush1.msra.mxu0 %v1923
          %1942 = vmatprep.subr.mxu0 0.0
          %1943 = vmatpush1.msra.mxu0 0.0
          %1944 = vmatprep.subr.mxu0 0.0
          %1945 = vmatpush1.msra.mxu0 0.0
          %1946 = vmatprep.subr.mxu0 0.0
          %1947 = vmatpush1.msra.mxu0 0.0
          %1948 = vmatprep.subr.mxu0 0.0
          %1949 = vmatpush1.msra.mxu0 0.0
          %1950 = vmatprep.subr.mxu0 0.0
          %1951 = vmatpush1.msra.mxu0 0.0
          %1952 = vmatprep.subr.mxu0 0.0
          %1953 = vmatpush1.msra.mxu0 0.0
          %1954 = vmatprep.subr.mxu0 0.0
          %1955 = vmatpush1.msra.mxu0 0.0
          %1956 = vmatprep.subr.mxu0 0.0
          %1957 = vmatpush1.msra.mxu0 0.0
          %1958 = vmatprep.subr.mxu0 0.0
          %1959 = vmatpush1.msra.mxu0 0.0
          %1960 = vmatprep.subr.mxu0 0.0
          %1961 = vmatpush1.msra.mxu0 0.0
          %1962 = vmatprep.subr.mxu0 0.0
          %1963 = vmatpush1.msra.mxu0 0.0
          %1964 = vmatprep.subr.mxu0 0.0
          %1965 = vmatpush1.msra.mxu0 0.0
          %1966 = vmatprep.subr.mxu0 0.0
          %1967 = vmatpush1.msra.mxu0 0.0
          %1968 = vmatprep.subr.mxu0 0.0
          %1969 = vmatpush1.msra.mxu0 0.0
          %1970 = vmatprep.subr.mxu0 0.0
          %1971 = vmatpush1.msra.mxu0 0.0
          %1972 = vmatprep.subr.mxu0 0.0
          %1973 = vmatpush1.msra.mxu0 0.0
          %1974 = vmatprep.subr.mxu0 0.0
          %1975 = vmatpush1.msra.mxu0 0.0
          %1976 = vmatprep.subr.mxu0 0.0
          %1977 = vmatpush1.msra.mxu0 0.0
          %1978 = vmatprep.subr.mxu0 0.0
          %1979 = vmatpush1.msra.mxu0 0.0
          %1980 = vmatprep.subr.mxu0 0.0
          %1981 = vmatpush1.msra.mxu0 0.0
          %1982 = vmatprep.subr.mxu0 0.0
          %1983 = vmatpush1.msra.mxu0 0.0
          %1984 = vmatprep.subr.mxu0 0.0
          %1985 = vmatpush1.msra.mxu0 0.0
          %1986 = vmatprep.subr.mxu0 0.0
          %1987 = vmatpush1.msra.mxu0 0.0
          %1988 = vmatprep.subr.mxu0 0.0
          %1989 = vmatpush1.msra.mxu0 0.0
          %1990 = vmatprep.subr.mxu0 0.0
          %1991 = vmatpush1.msra.mxu0 0.0
          %1992 = vmatprep.subr.mxu0 0.0
          %1993 = vmatpush1.msra.mxu0 0.0
          %1994 = vmatprep.subr.mxu0 0.0
          %1995 = vmatpush1.msra.mxu0 0.0
          %1996 = vmatprep.subr.mxu0 0.0
          %1997 = vmatpush1.msra.mxu0 0.0
          %1998 = vmatprep.mubr.f32.mxu0 0.0
          %1999 = vmatmul.mubr.f32.gmra.mrb[0].mxu0 %v1932
          %v2000 = vpop.f32.mrb[0].mxu0
          %v2001 = vadd.f32 %v1929, %v2000
          %v2002 = vpop.f32.mrb[0].mxu0
          %2003 = vdwg.mxu0
          %v2004 = vtanh.pop %v2001
          %v2005 = vld [vmem:[%s19] sm:$0xff]
          %v2006 = vld [vmem:[%s19 + $0x8] sm:$0xff]
          %v2007 = vld [vmem:[%s19 + $0x10] sm:$0xff]
          %v2008 = vld [vmem:[%s19 + $0x18] sm:$0xff]
          %v2009 = vld [vmem:[%s20] sm:$0x1]
          %v2011 = vlaneseq
          %v2012 = vshrl.u32 %v2011, 7
          %v2013 = vsub.s32 0, %v2012
          %v2014 = vrot.slane %v2009, %v2013
          %v2017 = vsel %vm884, %v2004, 0
          %2019 = vmatprep.subr.mxu0 0.0
          %2020 = vmatpush1.msra.mxu0 %v2005
          %2021 = vmatprep.subr.mxu0 0.0
          %2022 = vmatpush1.msra.mxu0 %v2006
          %2023 = vmatprep.subr.mxu0 0.0
          %2024 = vmatpush1.msra.mxu0 %v2007
          %2025 = vmatprep.subr.mxu0 0.0
          %2026 = vmatpush1.msra.mxu0 %v2008
          %2027 = vmatprep.subr.mxu0 0.0
          %2028 = vmatpush1.msra.mxu0 0.0
          %2029 = vmatprep.subr.mxu0 0.0
          %2030 = vmatpush1.msra.mxu0 0.0
          %2031 = vmatprep.subr.mxu0 0.0
          %2032 = vmatpush1.msra.mxu0 0.0
          %2033 = vmatprep.subr.mxu0 0.0
          %2034 = vmatpush1.msra.mxu0 0.0
          %2035 = vmatprep.subr.mxu0 0.0
          %2036 = vmatpush1.msra.mxu0 0.0
          %2037 = vmatprep.subr.mxu0 0.0
          %2038 = vmatpush1.msra.mxu0 0.0
          %2039 = vmatprep.subr.mxu0 0.0
          %2040 = vmatpush1.msra.mxu0 0.0
          %2041 = vmatprep.subr.mxu0 0.0
          %2042 = vmatpush1.msra.mxu0 0.0
          %2043 = vmatprep.subr.mxu0 0.0
          %2044 = vmatpush1.msra.mxu0 0.0
          %2045 = vmatprep.subr.mxu0 0.0
          %2046 = vmatpush1.msra.mxu0 0.0
          %2047 = vmatprep.subr.mxu0 0.0
          %2048 = vmatpush1.msra.mxu0 0.0
          %2049 = vmatprep.subr.mxu0 0.0
          %2050 = vmatpush1.msra.mxu0 0.0
          %2051 = vmatprep.subr.mxu0 0.0
          %2052 = vmatpush1.msra.mxu0 0.0
          %2053 = vmatprep.subr.mxu0 0.0
          %2054 = vmatpush1.msra.mxu0 0.0
          %2055 = vmatprep.subr.mxu0 0.0
          %2056 = vmatpush1.msra.mxu0 0.0
          %2057 = vmatprep.subr.mxu0 0.0
          %2058 = vmatpush1.msra.mxu0 0.0
          %2059 = vmatprep.subr.mxu0 0.0
          %2060 = vmatpush1.msra.mxu0 0.0
          %2061 = vmatprep.subr.mxu0 0.0
          %2062 = vmatpush1.msra.mxu0 0.0
          %2063 = vmatprep.subr.mxu0 0.0
          %2064 = vmatpush1.msra.mxu0 0.0
          %2065 = vmatprep.subr.mxu0 0.0
          %2066 = vmatpush1.msra.mxu0 0.0
          %2067 = vmatprep.subr.mxu0 0.0
          %2068 = vmatpush1.msra.mxu0 0.0
          %2069 = vmatprep.subr.mxu0 0.0
          %2070 = vmatpush1.msra.mxu0 0.0
          %2071 = vmatprep.subr.mxu0 0.0
          %2072 = vmatpush1.msra.mxu0 0.0
          %2073 = vmatprep.subr.mxu0 0.0
          %2074 = vmatpush1.msra.mxu0 0.0
          %2075 = vmatprep.subr.mxu0 0.0
          %2076 = vmatpush1.msra.mxu0 0.0
          %2077 = vmatprep.subr.mxu0 0.0
          %2078 = vmatpush1.msra.mxu0 0.0
          %2079 = vmatprep.subr.mxu0 0.0
          %2080 = vmatpush1.msra.mxu0 0.0
          %2081 = vmatprep.subr.mxu0 0.0
          %2082 = vmatpush1.msra.mxu0 0.0
          %2083 = vmatprep.mubr.f32.mxu0 0.0
          %2084 = vmatmul.mubr.f32.gmra.mrb[0].mxu0 %v2017
          %v2085 = vpop.f32.mrb[0].mxu0
          %v2086 = vadd.f32 %v2014, %v2085
          %v2087 = vpop.f32.mrb[0].mxu0
          %2088 = vdwg.mxu0
          %vm2089 = vcmask 9216
          %2090 = vst.msk [vmem:[#allocation3] sm:$0x3] %vm2089, %v2086
        $region112: #{sentiment_analyzer_forward.1} parent=103 // pred_fallthru
          _
        // Predicated region
        $region113: #{sentiment_analyzer_forward.1} parent=103 // pred_check
          %p2091 = pneg %p547
        $region114: #{sentiment_analyzer_forward.1} parent=103 // pred_check_branch
          %2093 = sbr.rel (%p2091) target = $region116
        $region115: #{sentiment_analyzer_forward.1} parent=103 // pred_region
          %s2095 = ssub.s32 32, 32
          %2096 = vsyncadd [#allocation4], %s2095
          %s2098 = sshll.u32 [#allocation3], 4
          %s2099 = int_to_ptr.vmem [resolvable:$true] %s2098
          %2101 = dma.vmem_to_hbm [thread:$0]  %s2099, 32, %s21, [#allocation4]
        $region116: #{sentiment_analyzer_forward.1} parent=103 // pred_fallthru
          _
        // Predicated region
        $region117: #{sentiment_analyzer_forward.1} parent=103 // pred_check
          %p2102 = pneg %p547
        $region118: #{sentiment_analyzer_forward.1} parent=103 // pred_check_branch
          %2104 = sbr.rel (%p2102) target = $region120
        $region119: #{sentiment_analyzer_forward.1} parent=103 // pred_region
          %2105 = dma.done [#allocation4], 32
        $region120: #{sentiment_analyzer_forward.1} parent=103 // pred_fallthru
          _
      $region104: #{sentiment_analyzer_forward.1} parent=5 // pred_fallthru
        _
      %p2106 = scmp.le.s32.totalorder 2, %s28
      // Predicated region
      $region121: #{sentiment_analyzer_forward.1} parent=5 // pred_check
        %p2107 = pneg %p2106
      $region122: #{sentiment_analyzer_forward.1} parent=5 // pred_check_branch
        %2109 = sbr.rel (%p2107) target = $region124
      $region123: #{sentiment_analyzer_forward.1} parent=5 // pred_region
        %s2110 = ssub.s32 %s28, 2
      $region124: #{sentiment_analyzer_forward.1} parent=5 // pred_fallthru
        _
    $region6: #{sentiment_analyzer_forward.1} parent=1 // loop_footer
      %s32 = sadd.s32 1, %s28
    $region7: #{sentiment_analyzer_forward.1} parent=1 // loop_footer_branch
      %27 = sbr.rel target = $region3
    $region8: #{sentiment_analyzer_forward.1} parent=1 // loop_exit
      _
    %2111 = vsyncpa [#allocation4], 1
    %s2112 = scalar_lea.sflag [#allocation4], 1
    %2113 = vsyncpa %s2112, 1

</llo_original>
